<compile_context>
chip_gen: v7x
topology: tpu7x:2x2x1
jax: 0.10.0
libtpu: 0.0.40
codegen_flags: <defaults>
</compile_context>

<pallas_src>
import jax
import jax.numpy as jnp
from jax.experimental import pallas as pl
from jax.experimental.pallas import tpu as pltpu

_LANES = 128         # lane-dense padded head width: label(10) | domain(2) | 0-pad
_TARGET_BLOCK = 128  # batch rows per grid step (multiple of 8)


# ------------------------------ Pallas kernel -------------------------------

def _dann_fused_kernel(pt_ref, wc_ref, bc_ref, w1_ref, b1_ref, wh_ref, bh_ref,
                       out_ref):
    # pt_ref : [Cin*9, B*HW]   bf16  im2col patches, k-major (batch*spatial lanes)
    # wc_ref : [Cout, Cin*9]   bf16  conv weight (torch layout flattened)
    # bc_ref : [Cout, 1]       f32   conv bias as a column (lane broadcast)
    # w1_ref : [Cout, HW, Hid] f32   fc1 weight in NCHW-flatten order
    # b1_ref : [1, Hid]        f32   fc1 bias
    # wh_ref : [Hid, 128]      f32   [label | domain | 0-pad] head weights
    # bh_ref : [1, 128]        f32   [label | domain | 0-pad] head biases
    # out_ref: [B, 128]        f32   batch rows x lane-dense head slab
    cout, hw, _ = w1_ref.shape
    bsz = out_ref.shape[0]

    # Conv for the whole batch block as ONE channel-major MXU matmul.
    a = jnp.dot(wc_ref[...], pt_ref[...],
                preferred_element_type=jnp.float32)            # [Cout, B*HW]
    a = jnp.maximum(a + bc_ref[...], 0.0)                      # bias + ReLU
    # Row-major split of (B*HW) -> (B, HW): each a[c] is the batch's NCHW
    # feature slab for channel c, so no activation transpose is ever needed.
    a = a.reshape(cout, bsz, hw)                               # [Cout, B, HW]

    # fc1 (Linear 2048->32) + ReLU: Cout accumulated [B,HW]@[HW,Hid] matmuls.
    f = jnp.zeros((bsz, b1_ref.shape[1]), jnp.float32)
    for c in range(cout):                                      # static unroll (8)
        f = f + jnp.dot(a[c], w1_ref[c], preferred_element_type=jnp.float32)
    f = jnp.maximum(f + b1_ref[...], 0.0)                      # [B, Hid]

    # Label + domain heads in one lane-dense matmul.  The gradient-reversal
    # layer is identity in the forward pass, so both heads see f.
    out_ref[...] = jnp.dot(f, wh_ref[...],
                           preferred_element_type=jnp.float32) + bh_ref[...]


# ------------------------------ JAX wrapper ---------------------------------

def dann_forward(x, params, alpha=1.0):
    """x: [N, C, H, W] float32 (NCHW, PyTorch convention). alpha: GRL scale."""
    del alpha  # gradient reversal only scales gradients; identity in forward
    N, C, H, W = x.shape
    conv_w, conv_b, fc1_w, fc1_b, lbl_w, lbl_b, dom_w, dom_b = params
    cout = conv_w.shape[0]
    kh, kw = conv_w.shape[2], conv_w.shape[3]
    ck2 = C * kh * kw
    hidden = fc1_w.shape[1]
    n_cls = lbl_w.shape[1]
    n_dom = dom_w.shape[1]
    hw = H * W

    # ---- batch blocking (pad N to a multiple of the block size) ------------
    bsz = min(_TARGET_BLOCK, max(8, -(-N // 8) * 8))           # multiple of 8
    n_blocks = -(-N // bsz)
    n_pad = n_blocks * bsz

    # ---- host-side glue (layout-only, cheap) --------------------------------
    xb = x if n_pad == N else jnp.pad(x, ((0, n_pad - N), (0, 0), (0, 0), (0, 0)))
    xp = jnp.pad(xb, ((0, 0), (0, 0), (1, 1), (1, 1)))         # conv padding
    taps = [xp[:, :, di:di + H, dj:dj + W]
            for di in range(kh) for dj in range(kw)]
    # pt[cin*9 + kk, n*HW + h*W + w] = xp[n, cin, h+di, w+dj]   (k-major)
    pt = (jnp.stack(taps, axis=2)              # [Np, C, 9, H, W]
            .transpose(1, 2, 0, 3, 4)          # [C, 9, Np, H, W]
            .reshape(ck2, n_pad * hw)
            .astype(jnp.bfloat16))             # halve the dominant HBM stream

    wc = conv_w.reshape(cout, ck2).astype(jnp.bfloat16)        # [8, 36]
    bc = conv_b.reshape(cout, 1).astype(jnp.float32)           # [8, 1]
    w1 = fc1_w.reshape(cout, hw, hidden).astype(jnp.float32)   # [8, 256, 32]
    b1 = fc1_b.reshape(1, hidden).astype(jnp.float32)          # [1, 32]

    # Concat + zero-pad both heads into a single lane-dense 128-wide slab.
    wh = jnp.zeros((hidden, _LANES), jnp.float32)
    wh = wh.at[:, :n_cls].set(lbl_w).at[:, n_cls:n_cls + n_dom].set(dom_w)
    bh = jnp.zeros((1, _LANES), jnp.float32)
    bh = bh.at[0, :n_cls].set(lbl_b).at[0, n_cls:n_cls + n_dom].set(dom_b)

    flops = n_pad * (2 * cout * ck2 * hw + 2 * cout * hw * hidden
                     + 2 * hidden * _LANES)
    bytes_accessed = (2 * (pt.size + wc.size)
                      + 4 * (bc.size + w1.size + b1.size + wh.size + bh.size)
                      + 4 * n_pad * _LANES)

    out = pl.pallas_call(
        _dann_fused_kernel,
        out_shape=jax.ShapeDtypeStruct((n_pad, _LANES), jnp.float32),
        grid=(n_blocks,),
        in_specs=[
            pl.BlockSpec((ck2, bsz * hw), lambda i: (0, i)),       # per-block patches
            pl.BlockSpec((cout, ck2), lambda i: (0, 0)),           # weights: constant
            pl.BlockSpec((cout, 1), lambda i: (0, 0)),             # index maps, fetched
            pl.BlockSpec((cout, hw, hidden), lambda i: (0, 0, 0)), # once
            pl.BlockSpec((1, hidden), lambda i: (0, 0)),
            pl.BlockSpec((hidden, _LANES), lambda i: (0, 0)),
            pl.BlockSpec((1, _LANES), lambda i: (0, 0)),
        ],
        out_specs=pl.BlockSpec((bsz, _LANES), lambda i: (i, 0)),
        compiler_params=pltpu.CompilerParams(
            dimension_semantics=("parallel",)),
        cost_estimate=pl.CostEstimate(flops=flops, transcendentals=0,
                                      bytes_accessed=bytes_accessed),
    )(pt, wc, bc, w1, b1, wh, bh)

    heads = out[:N]                                             # drop batch padding
    return heads[:, :n_cls], heads[:, n_cls:n_cls + n_dom]


# --------------------------- params / reference -----------------------------

def init_params(key, c_in=4, c_out=8, h=16, w=16, hidden=32,
                n_classes=10, n_domains=2):
    ks = jax.random.split(key, 8)
    conv_w = jax.random.normal(ks[0], (c_out, c_in, 3, 3), jnp.float32) * 0.1
    conv_b = jax.random.normal(ks[1], (c_out,), jnp.float32) * 0.1
    fc1_w = jax.random.normal(ks[2], (c_out * h * w, hidden), jnp.float32) * 0.02
    fc1_b = jax.random.normal(ks[3], (hidden,), jnp.float32) * 0.1
    lbl_w = jax.random.normal(ks[4], (hidden, n_classes), jnp.float32) * 0.1
    lbl_b = jax.random.normal(ks[5], (n_classes,), jnp.float32) * 0.1
    dom_w = jax.random.normal(ks[6], (hidden, n_domains), jnp.float32) * 0.1
    dom_b = jax.random.normal(ks[7], (n_domains,), jnp.float32) * 0.1
    return (conv_w, conv_b, fc1_w, fc1_b, lbl_w, lbl_b, dom_w, dom_b)


def _reference_forward(x, params):
    """Pure-JAX reference with the original (NCHW-flatten) semantics."""
    conv_w, conv_b, fc1_w, fc1_b, lbl_w, lbl_b, dom_w, dom_b = params
    N, C, H, W = x.shape
    hp = jax.lax.Precision.HIGHEST
    xp = jnp.pad(x, ((0, 0), (0, 0), (1, 1), (1, 1)))
    taps = [xp[:, :, di:di + H, dj:dj + W] for di in range(3) for dj in range(3)]
    pats = jnp.stack(taps, axis=-1).transpose(0, 2, 3, 1, 4).reshape(N * H * W, -1)
    conv = jnp.maximum(
        jnp.dot(pats, conv_w.reshape(conv_w.shape[0], -1).T, precision=hp)
        + conv_b, 0.0)
    feat = conv.reshape(N, H, W, -1).transpose(0, 3, 1, 2).reshape(N, -1)
    f = jnp.maximum(jnp.dot(feat, fc1_w, precision=hp) + fc1_b, 0.0)
    return (jnp.dot(f, lbl_w, precision=hp) + lbl_b,
            jnp.dot(f, dom_w, precision=hp) + dom_b)


if __name__ == "__main__":
    key = jax.random.PRNGKey(0)
    k_x, k_p, k_x2 = jax.random.split(key, 3)
    params = init_params(k_p)

    # Small shape implied by the module: batch=2, 4 channels, 16x16 spatial.
    x = jax.random.normal(k_x, (2, 4, 16, 16), jnp.float32)    # NCHW
    class_out, domain_out = jax.jit(dann_forward)(x, params, 1.0)
    jax.block_until_ready((class_out, domain_out))

    assert class_out.shape == (2, 10) and domain_out.shape == (2, 2)
    assert class_out.dtype == jnp.float32 and domain_out.dtype == jnp.float32

    ref_cls, ref_dom = _reference_forward(x, params)
    assert jnp.allclose(class_out, ref_cls, atol=1e-2, rtol=1e-2)
    assert jnp.allclose(domain_out, ref_dom, atol=1e-2, rtol=1e-2)

    # Larger batch exercises the multi-block grid and tail padding path.
    x2 = jax.random.normal(k_x2, (200, 4, 16, 16), jnp.float32)
    c2, d2 = jax.jit(dann_forward)(x2, params, 0.5)
    jax.block_until_ready((c2, d2))
    r2c, r2d = _reference_forward(x2, params)
    assert c2.shape == (200, 10) and d2.shape == (200, 2)
    assert jnp.allclose(c2, r2c, atol=1e-2, rtol=1e-2)
    assert jnp.allclose(d2, r2d, atol=1e-2, rtol=1e-2)

    print("KERNEL_OK")
</pallas_src>

<mosaic_0001>
module attributes {stable_mosaic.version = 11 : i64} {
  func.func @_dann_fused_kernel(%arg0: i32, %arg1: memref<36x2048xbf16, #tpu.memory_space<vmem>>, %arg2: memref<8x36xbf16, #tpu.memory_space<vmem>>, %arg3: memref<8x1xf32, #tpu.memory_space<vmem>>, %arg4: memref<8x256x32xf32, #tpu.memory_space<vmem>>, %arg5: memref<1x32xf32, #tpu.memory_space<vmem>>, %arg6: memref<32x128xf32, #tpu.memory_space<vmem>>, %arg7: memref<1x128xf32, #tpu.memory_space<vmem>>, %arg8: memref<8x128xf32, #tpu.memory_space<vmem>>) attributes {dimension_semantics = [#tpu.dimension_semantics<parallel>], iteration_bounds = array<i64: 1>, scalar_prefetch = 0 : i64, scratch_operands = 0 : i64, tpu.core_type = #tpu.core_type<tc>, window_params = [{transform_indices = @transform_0, window_bounds = array<i64: 36, 2048>}, {pipeline_mode = #tpu.pipeline_mode<synchronous>, transform_indices = @transform_1, window_bounds = array<i64: 8, 36>}, {pipeline_mode = #tpu.pipeline_mode<synchronous>, transform_indices = @transform_2, window_bounds = array<i64: 8, 1>}, {pipeline_mode = #tpu.pipeline_mode<synchronous>, transform_indices = @transform_3, window_bounds = array<i64: 8, 256, 32>}, {pipeline_mode = #tpu.pipeline_mode<synchronous>, transform_indices = @transform_4, window_bounds = array<i64: 1, 32>}, {pipeline_mode = #tpu.pipeline_mode<synchronous>, transform_indices = @transform_5, window_bounds = array<i64: 32, 128>}, {pipeline_mode = #tpu.pipeline_mode<synchronous>, transform_indices = @transform_6, window_bounds = array<i64: 1, 128>}, {transform_indices = @transform_7, window_bounds = array<i64: 8, 128>}]} {
    %c0 = arith.constant 0 : index
    %c0_0 = arith.constant 0 : index
    %0 = vector.load %arg2[%c0, %c0_0] : memref<8x36xbf16, #tpu.memory_space<vmem>>, vector<8x36xbf16>
    %c0_1 = arith.constant 0 : index
    %c0_2 = arith.constant 0 : index
    %1 = vector.load %arg1[%c0_1, %c0_2] : memref<36x2048xbf16, #tpu.memory_space<vmem>>, vector<36x2048xbf16>
    %cst = arith.constant dense<0.000000e+00> : vector<8x2048xf32>
    %2 = tpu.matmul %0, %1, %cst {dimension_numbers = #tpu.dot_dimension_numbers<[1], [0], [0], [1], [0, 0, 1, 1], [], []>} : vector<8x36xbf16>, vector<36x2048xbf16>, vector<8x2048xf32> -> vector<8x2048xf32>
    %c0_3 = arith.constant 0 : index
    %c0_4 = arith.constant 0 : index
    %3 = vector.load %arg3[%c0_3, %c0_4] : memref<8x1xf32, #tpu.memory_space<vmem>>, vector<8x1xf32>
    %4 = vector.broadcast %3 : vector<8x1xf32> to vector<8x2048xf32>
    %5 = arith.addf %2, %4 : vector<8x2048xf32>
    %cst_5 = arith.constant 0.000000e+00 : f32
    %6 = vector.broadcast %cst_5 : f32 to vector<8x2048xf32>
    %7 = arith.maximumf %5, %6 : vector<8x2048xf32>
    %8 = vector.shape_cast %7 : vector<8x2048xf32> to vector<8x8x256xf32>
    %cst_6 = arith.constant 0.000000e+00 : f32
    %9 = vector.broadcast %cst_6 : f32 to vector<8x32xf32>
    %10 = vector.extract_strided_slice %8 {offsets = [0, 0, 0], sizes = [1, 8, 256], strides = [1, 1, 1]} : vector<8x8x256xf32> to vector<1x8x256xf32>
    %11 = vector.shape_cast %10 : vector<1x8x256xf32> to vector<8x256xf32>
    %c0_7 = arith.constant 0 : index
    %c0_8 = arith.constant 0 : index
    %c0_9 = arith.constant 0 : index
    %12 = vector.load %arg4[%c0_7, %c0_8, %c0_9] : memref<8x256x32xf32, #tpu.memory_space<vmem>>, vector<1x256x32xf32>
    %13 = vector.shape_cast %12 : vector<1x256x32xf32> to vector<256x32xf32>
    %cst_10 = arith.constant dense<0.000000e+00> : vector<8x32xf32>
    %14 = tpu.matmul %11, %13, %cst_10 {dimension_numbers = #tpu.dot_dimension_numbers<[1], [0], [0], [1], [0, 0, 1, 1], [], []>} : vector<8x256xf32>, vector<256x32xf32>, vector<8x32xf32> -> vector<8x32xf32>
    %15 = arith.addf %9, %14 : vector<8x32xf32>
    %16 = vector.extract_strided_slice %8 {offsets = [1, 0, 0], sizes = [1, 8, 256], strides = [1, 1, 1]} : vector<8x8x256xf32> to vector<1x8x256xf32>
    %17 = vector.shape_cast %16 : vector<1x8x256xf32> to vector<8x256xf32>
    %c1 = arith.constant 1 : index
    %c0_11 = arith.constant 0 : index
    %c0_12 = arith.constant 0 : index
    %18 = vector.load %arg4[%c1, %c0_11, %c0_12] : memref<8x256x32xf32, #tpu.memory_space<vmem>>, vector<1x256x32xf32>
    %19 = vector.shape_cast %18 : vector<1x256x32xf32> to vector<256x32xf32>
    %cst_13 = arith.constant dense<0.000000e+00> : vector<8x32xf32>
    %20 = tpu.matmul %17, %19, %cst_13 {dimension_numbers = #tpu.dot_dimension_numbers<[1], [0], [0], [1], [0, 0, 1, 1], [], []>} : vector<8x256xf32>, vector<256x32xf32>, vector<8x32xf32> -> vector<8x32xf32>
    %21 = arith.addf %15, %20 : vector<8x32xf32>
    %22 = vector.extract_strided_slice %8 {offsets = [2, 0, 0], sizes = [1, 8, 256], strides = [1, 1, 1]} : vector<8x8x256xf32> to vector<1x8x256xf32>
    %23 = vector.shape_cast %22 : vector<1x8x256xf32> to vector<8x256xf32>
    %c2 = arith.constant 2 : index
    %c0_14 = arith.constant 0 : index
    %c0_15 = arith.constant 0 : index
    %24 = vector.load %arg4[%c2, %c0_14, %c0_15] : memref<8x256x32xf32, #tpu.memory_space<vmem>>, vector<1x256x32xf32>
    %25 = vector.shape_cast %24 : vector<1x256x32xf32> to vector<256x32xf32>
    %cst_16 = arith.constant dense<0.000000e+00> : vector<8x32xf32>
    %26 = tpu.matmul %23, %25, %cst_16 {dimension_numbers = #tpu.dot_dimension_numbers<[1], [0], [0], [1], [0, 0, 1, 1], [], []>} : vector<8x256xf32>, vector<256x32xf32>, vector<8x32xf32> -> vector<8x32xf32>
    %27 = arith.addf %21, %26 : vector<8x32xf32>
    %28 = vector.extract_strided_slice %8 {offsets = [3, 0, 0], sizes = [1, 8, 256], strides = [1, 1, 1]} : vector<8x8x256xf32> to vector<1x8x256xf32>
    %29 = vector.shape_cast %28 : vector<1x8x256xf32> to vector<8x256xf32>
    %c3 = arith.constant 3 : index
    %c0_17 = arith.constant 0 : index
    %c0_18 = arith.constant 0 : index
    %30 = vector.load %arg4[%c3, %c0_17, %c0_18] : memref<8x256x32xf32, #tpu.memory_space<vmem>>, vector<1x256x32xf32>
    %31 = vector.shape_cast %30 : vector<1x256x32xf32> to vector<256x32xf32>
    %cst_19 = arith.constant dense<0.000000e+00> : vector<8x32xf32>
    %32 = tpu.matmul %29, %31, %cst_19 {dimension_numbers = #tpu.dot_dimension_numbers<[1], [0], [0], [1], [0, 0, 1, 1], [], []>} : vector<8x256xf32>, vector<256x32xf32>, vector<8x32xf32> -> vector<8x32xf32>
    %33 = arith.addf %27, %32 : vector<8x32xf32>
    %34 = vector.extract_strided_slice %8 {offsets = [4, 0, 0], sizes = [1, 8, 256], strides = [1, 1, 1]} : vector<8x8x256xf32> to vector<1x8x256xf32>
    %35 = vector.shape_cast %34 : vector<1x8x256xf32> to vector<8x256xf32>
    %c4 = arith.constant 4 : index
    %c0_20 = arith.constant 0 : index
    %c0_21 = arith.constant 0 : index
    %36 = vector.load %arg4[%c4, %c0_20, %c0_21] : memref<8x256x32xf32, #tpu.memory_space<vmem>>, vector<1x256x32xf32>
    %37 = vector.shape_cast %36 : vector<1x256x32xf32> to vector<256x32xf32>
    %cst_22 = arith.constant dense<0.000000e+00> : vector<8x32xf32>
    %38 = tpu.matmul %35, %37, %cst_22 {dimension_numbers = #tpu.dot_dimension_numbers<[1], [0], [0], [1], [0, 0, 1, 1], [], []>} : vector<8x256xf32>, vector<256x32xf32>, vector<8x32xf32> -> vector<8x32xf32>
    %39 = arith.addf %33, %38 : vector<8x32xf32>
    %40 = vector.extract_strided_slice %8 {offsets = [5, 0, 0], sizes = [1, 8, 256], strides = [1, 1, 1]} : vector<8x8x256xf32> to vector<1x8x256xf32>
    %41 = vector.shape_cast %40 : vector<1x8x256xf32> to vector<8x256xf32>
    %c5 = arith.constant 5 : index
    %c0_23 = arith.constant 0 : index
    %c0_24 = arith.constant 0 : index
    %42 = vector.load %arg4[%c5, %c0_23, %c0_24] : memref<8x256x32xf32, #tpu.memory_space<vmem>>, vector<1x256x32xf32>
    %43 = vector.shape_cast %42 : vector<1x256x32xf32> to vector<256x32xf32>
    %cst_25 = arith.constant dense<0.000000e+00> : vector<8x32xf32>
    %44 = tpu.matmul %41, %43, %cst_25 {dimension_numbers = #tpu.dot_dimension_numbers<[1], [0], [0], [1], [0, 0, 1, 1], [], []>} : vector<8x256xf32>, vector<256x32xf32>, vector<8x32xf32> -> vector<8x32xf32>
    %45 = arith.addf %39, %44 : vector<8x32xf32>
    %46 = vector.extract_strided_slice %8 {offsets = [6, 0, 0], sizes = [1, 8, 256], strides = [1, 1, 1]} : vector<8x8x256xf32> to vector<1x8x256xf32>
    %47 = vector.shape_cast %46 : vector<1x8x256xf32> to vector<8x256xf32>
    %c6 = arith.constant 6 : index
    %c0_26 = arith.constant 0 : index
    %c0_27 = arith.constant 0 : index
    %48 = vector.load %arg4[%c6, %c0_26, %c0_27] : memref<8x256x32xf32, #tpu.memory_space<vmem>>, vector<1x256x32xf32>
    %49 = vector.shape_cast %48 : vector<1x256x32xf32> to vector<256x32xf32>
    %cst_28 = arith.constant dense<0.000000e+00> : vector<8x32xf32>
    %50 = tpu.matmul %47, %49, %cst_28 {dimension_numbers = #tpu.dot_dimension_numbers<[1], [0], [0], [1], [0, 0, 1, 1], [], []>} : vector<8x256xf32>, vector<256x32xf32>, vector<8x32xf32> -> vector<8x32xf32>
    %51 = arith.addf %45, %50 : vector<8x32xf32>
    %52 = vector.extract_strided_slice %8 {offsets = [7, 0, 0], sizes = [1, 8, 256], strides = [1, 1, 1]} : vector<8x8x256xf32> to vector<1x8x256xf32>
    %53 = vector.shape_cast %52 : vector<1x8x256xf32> to vector<8x256xf32>
    %c7 = arith.constant 7 : index
    %c0_29 = arith.constant 0 : index
    %c0_30 = arith.constant 0 : index
    %54 = vector.load %arg4[%c7, %c0_29, %c0_30] : memref<8x256x32xf32, #tpu.memory_space<vmem>>, vector<1x256x32xf32>
    %55 = vector.shape_cast %54 : vector<1x256x32xf32> to vector<256x32xf32>
    %cst_31 = arith.constant dense<0.000000e+00> : vector<8x32xf32>
    %56 = tpu.matmul %53, %55, %cst_31 {dimension_numbers = #tpu.dot_dimension_numbers<[1], [0], [0], [1], [0, 0, 1, 1], [], []>} : vector<8x256xf32>, vector<256x32xf32>, vector<8x32xf32> -> vector<8x32xf32>
    %57 = arith.addf %51, %56 : vector<8x32xf32>
    %c0_32 = arith.constant 0 : index
    %c0_33 = arith.constant 0 : index
    %58 = vector.load %arg5[%c0_32, %c0_33] : memref<1x32xf32, #tpu.memory_space<vmem>>, vector<1x32xf32>
    %59 = vector.broadcast %58 : vector<1x32xf32> to vector<8x32xf32>
    %60 = arith.addf %57, %59 : vector<8x32xf32>
    %cst_34 = arith.constant 0.000000e+00 : f32
    %61 = vector.broadcast %cst_34 : f32 to vector<8x32xf32>
    %62 = arith.maximumf %60, %61 : vector<8x32xf32>
    %c0_35 = arith.constant 0 : index
    %c0_36 = arith.constant 0 : index
    %63 = vector.load %arg6[%c0_35, %c0_36] : memref<32x128xf32, #tpu.memory_space<vmem>>, vector<32x128xf32>
    %cst_37 = arith.constant dense<0.000000e+00> : vector<8x128xf32>
    %64 = tpu.matmul %62, %63, %cst_37 {dimension_numbers = #tpu.dot_dimension_numbers<[1], [0], [0], [1], [0, 0, 1, 1], [], []>} : vector<8x32xf32>, vector<32x128xf32>, vector<8x128xf32> -> vector<8x128xf32>
    %c0_38 = arith.constant 0 : index
    %c0_39 = arith.constant 0 : index
    %65 = vector.load %arg7[%c0_38, %c0_39] : memref<1x128xf32, #tpu.memory_space<vmem>>, vector<1x128xf32>
    %66 = vector.broadcast %65 : vector<1x128xf32> to vector<8x128xf32>
    %67 = arith.addf %64, %66 : vector<8x128xf32>
    %c0_40 = arith.constant 0 : index
    %c0_41 = arith.constant 0 : index
    %68 = vector.load %arg8[%c0_40, %c0_41] : memref<8x128xf32, #tpu.memory_space<vmem>>, vector<8x128xf32>
    tpu.vector_store %arg8[%c0_40, %c0_41], %67 {strides = array<i32>} : memref<8x128xf32, #tpu.memory_space<vmem>>, vector<8x128xf32>,
    return
  }
  func.func @transform_0(%arg0: i32) -> (i32, i32) {
    %c0_i32 = arith.constant 0 : i32
    %c0_i32_0 = arith.constant 0 : i32
    return %c0_i32, %arg0 : i32, i32
  }
  func.func @transform_1(%arg0: i32) -> (i32, i32) {
    %c0_i32 = arith.constant 0 : i32
    %c0_i32_0 = arith.constant 0 : i32
    %c0_i32_1 = arith.constant 0 : i32
    return %c0_i32, %c0_i32_0 : i32, i32
  }
  func.func @transform_2(%arg0: i32) -> (i32, i32) {
    %c0_i32 = arith.constant 0 : i32
    %c0_i32_0 = arith.constant 0 : i32
    %c0_i32_1 = arith.constant 0 : i32
    return %c0_i32, %c0_i32_0 : i32, i32
  }
  func.func @transform_3(%arg0: i32) -> (i32, i32, i32) {
    %c0_i32 = arith.constant 0 : i32
    %c0_i32_0 = arith.constant 0 : i32
    %c0_i32_1 = arith.constant 0 : i32
    %c0_i32_2 = arith.constant 0 : i32
    return %c0_i32, %c0_i32_0, %c0_i32_1 : i32, i32, i32
  }
  func.func @transform_4(%arg0: i32) -> (i32, i32) {
    %c0_i32 = arith.constant 0 : i32
    %c0_i32_0 = arith.constant 0 : i32
    %c0_i32_1 = arith.constant 0 : i32
    return %c0_i32, %c0_i32_0 : i32, i32
  }
  func.func @transform_5(%arg0: i32) -> (i32, i32) {
    %c0_i32 = arith.constant 0 : i32
    %c0_i32_0 = arith.constant 0 : i32
    %c0_i32_1 = arith.constant 0 : i32
    return %c0_i32, %c0_i32_0 : i32, i32
  }
  func.func @transform_6(%arg0: i32) -> (i32, i32) {
    %c0_i32 = arith.constant 0 : i32
    %c0_i32_0 = arith.constant 0 : i32
    %c0_i32_1 = arith.constant 0 : i32
    return %c0_i32, %c0_i32_0 : i32, i32
  }
  func.func @transform_7(%arg0: i32) -> (i32, i32) {
    %c0_i32 = arith.constant 0 : i32
    %c0_i32_0 = arith.constant 0 : i32
    return %arg0, %c0_i32 : i32, i32
  }
}

</mosaic_0001>

<llo_original>
// kernel: dann_forward.1
$region0: #{dann_forward.1}
  #allocation0 [shape = 'u32[]', space=smem, size = 0x4, offset = 0x4, fixed_abs, tag = 'smem constant byte address 0x4 - core index']
  #allocation1 [shape = 'u32[144,128]{1,0:T(1,128)}', space=vmem, size = 0x12000, scoped, tag = 'internal scratch']
  %s0 = inlined_call_operand.vmem [shape: bf16[36,2048], index: 0, kind: input, shape index: {}]
  %s1 = inlined_call_operand.vmem [shape: bf16[8,36], index: 1, kind: input, shape index: {}]
  %s2 = inlined_call_operand.vmem [shape: f32[8,1], index: 2, kind: input, shape index: {}]
  %s3 = inlined_call_operand.vmem [shape: f32[8,256,32], index: 3, kind: input, shape index: {}]
  %s4 = inlined_call_operand.vmem [shape: f32[1,32], index: 4, kind: input, shape index: {}]
  %s5 = inlined_call_operand.vmem [shape: f32[32,128], index: 5, kind: input, shape index: {}]
  %s6 = inlined_call_operand.vmem [shape: f32[1,128], index: 6, kind: input, shape index: {}]
  %s7 = inlined_call_operand.vmem [shape: f32[8,128], index: 7, kind: output, shape index: {}]
  %s8 = sld [smem:[#allocation0]]
  $region38: #{dann_forward.1} parent=0
    _
  %s10 = ssub.s32 1, %s8
  %s11 = scalar_select 0, %s10, %s8
  // Predicated region
  $region2: #{dann_forward.1} parent=0 // pred_check
    _
  $region3: #{dann_forward.1} parent=0 // pred_check_branch
    %13 = sbr.rel (0) target = $region5
  $region4: #{dann_forward.1} parent=0 // pred_region
    _
  $region5: #{dann_forward.1} parent=0 // pred_fallthru
    _
  // Predicated region
  $region6: #{dann_forward.1} parent=0 // pred_check
    _
  $region7: #{dann_forward.1} parent=0 // pred_check_branch
    %15 = sbr.rel (0) target = $region9
  $region8: #{dann_forward.1} parent=0 // pred_region
    _
  $region9: #{dann_forward.1} parent=0 // pred_fallthru
    _
  // Predicated region
  $region10: #{dann_forward.1} parent=0 // pred_check
    _
  $region11: #{dann_forward.1} parent=0 // pred_check_branch
    %17 = sbr.rel (0) target = $region13
  $region12: #{dann_forward.1} parent=0 // pred_region
    _
  $region13: #{dann_forward.1} parent=0 // pred_fallthru
    _
  // Predicated region
  $region14: #{dann_forward.1} parent=0 // pred_check
    _
  $region15: #{dann_forward.1} parent=0 // pred_check_branch
    %19 = sbr.rel (0) target = $region17
  $region16: #{dann_forward.1} parent=0 // pred_region
    _
  $region17: #{dann_forward.1} parent=0 // pred_fallthru
    _
  // Predicated region
  $region18: #{dann_forward.1} parent=0 // pred_check
    _
  $region19: #{dann_forward.1} parent=0 // pred_check_branch
    %21 = sbr.rel (0) target = $region21
  $region20: #{dann_forward.1} parent=0 // pred_region
    _
  $region21: #{dann_forward.1} parent=0 // pred_fallthru
    _
  // Predicated region
  $region22: #{dann_forward.1} parent=0 // pred_check
    _
  $region23: #{dann_forward.1} parent=0 // pred_check_branch
    %23 = sbr.rel (0) target = $region25
  $region24: #{dann_forward.1} parent=0 // pred_region
    _
  $region25: #{dann_forward.1} parent=0 // pred_fallthru
    _
  // Predicated region
  $region26: #{dann_forward.1} parent=0 // pred_check
    _
  $region27: #{dann_forward.1} parent=0 // pred_check_branch
    %25 = sbr.rel (0) target = $region29
  $region28: #{dann_forward.1} parent=0 // pred_region
    _
  $region29: #{dann_forward.1} parent=0 // pred_fallthru
    _
  %v27 = vld [vmem:[%s1] sm:$0xf]
  %v28 = vld [vmem:[%s0] sm:$0xff]
  %v29 = vld [vmem:[%s0 + $0x8] sm:$0xff]
  %v30 = vld [vmem:[%s0 + $0x10] sm:$0xff]
  %v31 = vld [vmem:[%s0 + $0x18] sm:$0xff]
  %v32 = vld [vmem:[%s0 + $0x20] sm:$0xff]
  %v33 = vld [vmem:[%s0 + $0x28] sm:$0xff]
  %v34 = vld [vmem:[%s0 + $0x30] sm:$0xff]
  %v35 = vld [vmem:[%s0 + $0x38] sm:$0xff]
  %v36 = vld [vmem:[%s0 + $0x40] sm:$0xff]
  %v37 = vld [vmem:[%s0 + $0x48] sm:$0xff]
  %v38 = vld [vmem:[%s0 + $0x50] sm:$0xff]
  %v39 = vld [vmem:[%s0 + $0x58] sm:$0xff]
  %v40 = vld [vmem:[%s0 + $0x60] sm:$0xff]
  %v41 = vld [vmem:[%s0 + $0x68] sm:$0xff]
  %v42 = vld [vmem:[%s0 + $0x70] sm:$0xff]
  %v43 = vld [vmem:[%s0 + $0x78] sm:$0xff]
  %v44 = vld [vmem:[%s0 + $0x80] sm:$0xff]
  %v45 = vld [vmem:[%s0 + $0x88] sm:$0xff]
  %v46 = vld [vmem:[%s0 + $0x90] sm:$0xff]
  %v47 = vld [vmem:[%s0 + $0x98] sm:$0xff]
  %v48 = vld [vmem:[%s0 + $0xa0] sm:$0xff]
  %v49 = vld [vmem:[%s0 + $0xa8] sm:$0xff]
  %v50 = vld [vmem:[%s0 + $0xb0] sm:$0xff]
  %v51 = vld [vmem:[%s0 + $0xb8] sm:$0xff]
  %v52 = vld [vmem:[%s0 + $0xc0] sm:$0xff]
  %v53 = vld [vmem:[%s0 + $0xc8] sm:$0xff]
  %v54 = vld [vmem:[%s0 + $0xd0] sm:$0xff]
  %v55 = vld [vmem:[%s0 + $0xd8] sm:$0xff]
  %v56 = vld [vmem:[%s0 + $0xe0] sm:$0xff]
  %v57 = vld [vmem:[%s0 + $0xe8] sm:$0xff]
  %v58 = vld [vmem:[%s0 + $0xf0] sm:$0xff]
  %v59 = vld [vmem:[%s0 + $0xf8] sm:$0xff]
  %v60 = vld [vmem:[%s0 + $0x100] sm:$0x33]
  %v61 = vld [vmem:[%s0 + $0x108] sm:$0x33]
  %v62 = vld [vmem:[%s0 + $0x110] sm:$0x33]
  %v63 = vld [vmem:[%s0 + $0x118] sm:$0x33]
  %v64 = vld [vmem:[%s0 + $0x120] sm:$0x33]
  %v65 = vld [vmem:[%s0 + $0x128] sm:$0x33]
  %v66 = vld [vmem:[%s0 + $0x130] sm:$0x33]
  %v67 = vld [vmem:[%s0 + $0x138] sm:$0x33]
  %v68 = vld [vmem:[%s2] sm:$0xff]
  %70 = vset.pattern.permute.xlu0 0
  %71 = vperm.xlu0 %70, %v68
  %v72 = vpop.permute.xlu0 %71
  %v114 = vunpack.c.l.b16 %v28
  %v115 = vunpack.c.h.b16 %v28
  %v116 = vunpack.c.l.b16 %v29
  %v117 = vunpack.c.h.b16 %v29
  %v118 = vunpack.c.l.b16 %v30
  %v119 = vunpack.c.h.b16 %v30
  %v120 = vunpack.c.l.b16 %v31
  %v121 = vunpack.c.h.b16 %v31
  %v122 = vunpack.c.l.b16 %v32
  %v123 = vunpack.c.h.b16 %v32
  %v124 = vunpack.c.l.b16 %v33
  %v125 = vunpack.c.h.b16 %v33
  %v126 = vunpack.c.l.b16 %v34
  %v127 = vunpack.c.h.b16 %v34
  %v128 = vunpack.c.l.b16 %v35
  %v129 = vunpack.c.h.b16 %v35
  %v130 = vunpack.c.l.b16 %v36
  %v131 = vunpack.c.h.b16 %v36
  %v132 = vunpack.c.l.b16 %v37
  %v133 = vunpack.c.h.b16 %v37
  %v134 = vunpack.c.l.b16 %v38
  %v135 = vunpack.c.h.b16 %v38
  %v136 = vunpack.c.l.b16 %v39
  %v137 = vunpack.c.h.b16 %v39
  %v138 = vunpack.c.l.b16 %v40
  %v139 = vunpack.c.h.b16 %v40
  %v140 = vunpack.c.l.b16 %v41
  %v141 = vunpack.c.h.b16 %v41
  %v142 = vunpack.c.l.b16 %v42
  %v143 = vunpack.c.h.b16 %v42
  %v144 = vunpack.c.l.b16 %v43
  %v145 = vunpack.c.h.b16 %v43
  %v146 = vunpack.c.l.b16 %v44
  %v147 = vunpack.c.h.b16 %v44
  %v148 = vunpack.c.l.b16 %v45
  %v149 = vunpack.c.h.b16 %v45
  %v150 = vunpack.c.l.b16 %v46
  %v151 = vunpack.c.h.b16 %v46
  %v152 = vunpack.c.l.b16 %v47
  %v153 = vunpack.c.h.b16 %v47
  %v154 = vunpack.c.l.b16 %v48
  %v155 = vunpack.c.h.b16 %v48
  %v156 = vunpack.c.l.b16 %v49
  %v157 = vunpack.c.h.b16 %v49
  %v158 = vunpack.c.l.b16 %v50
  %v159 = vunpack.c.h.b16 %v50
  %v160 = vunpack.c.l.b16 %v51
  %v161 = vunpack.c.h.b16 %v51
  %v162 = vunpack.c.l.b16 %v52
  %v163 = vunpack.c.h.b16 %v52
  %v164 = vunpack.c.l.b16 %v53
  %v165 = vunpack.c.h.b16 %v53
  %v166 = vunpack.c.l.b16 %v54
  %v167 = vunpack.c.h.b16 %v54
  %v168 = vunpack.c.l.b16 %v55
  %v169 = vunpack.c.h.b16 %v55
  %v170 = vunpack.c.l.b16 %v56
  %v171 = vunpack.c.h.b16 %v56
  %v172 = vunpack.c.l.b16 %v57
  %v173 = vunpack.c.h.b16 %v57
  %v174 = vunpack.c.l.b16 %v58
  %v175 = vunpack.c.h.b16 %v58
  %v176 = vunpack.c.l.b16 %v59
  %v177 = vunpack.c.h.b16 %v59
  %v178 = vunpack.c.l.b16 %v60
  %v179 = vunpack.c.h.b16 %v60
  %v180 = vunpack.c.l.b16 %v61
  %v181 = vunpack.c.h.b16 %v61
  %v182 = vunpack.c.l.b16 %v62
  %v183 = vunpack.c.h.b16 %v62
  %v184 = vunpack.c.l.b16 %v63
  %v185 = vunpack.c.h.b16 %v63
  %v186 = vunpack.c.l.b16 %v64
  %v187 = vunpack.c.h.b16 %v64
  %v188 = vunpack.c.l.b16 %v65
  %v189 = vunpack.c.h.b16 %v65
  %v190 = vunpack.c.l.b16 %v66
  %v191 = vunpack.c.h.b16 %v66
  %v192 = vunpack.c.l.b16 %v67
  %v193 = vunpack.c.h.b16 %v67
  %v194 = vpack.c.b16 %v130, %v114
  %v195 = vpack.c.b16 %v131, %v115
  %v196 = vpack.c.b16 %v132, %v116
  %v197 = vpack.c.b16 %v133, %v117
  %v198 = vpack.c.b16 %v134, %v118
  %v199 = vpack.c.b16 %v135, %v119
  %v200 = vpack.c.b16 %v136, %v120
  %v201 = vpack.c.b16 %v137, %v121
  %v202 = vpack.c.b16 %v138, %v122
  %v203 = vpack.c.b16 %v139, %v123
  %v204 = vpack.c.b16 %v140, %v124
  %v205 = vpack.c.b16 %v141, %v125
  %v206 = vpack.c.b16 %v142, %v126
  %v207 = vpack.c.b16 %v143, %v127
  %v208 = vpack.c.b16 %v144, %v128
  %v209 = vpack.c.b16 %v145, %v129
  %v210 = vpack.c.b16 %v162, %v146
  %v211 = vpack.c.b16 %v163, %v147
  %v212 = vpack.c.b16 %v164, %v148
  %v213 = vpack.c.b16 %v165, %v149
  %v214 = vpack.c.b16 %v166, %v150
  %v215 = vpack.c.b16 %v167, %v151
  %v216 = vpack.c.b16 %v168, %v152
  %v217 = vpack.c.b16 %v169, %v153
  %v218 = vpack.c.b16 %v170, %v154
  %v219 = vpack.c.b16 %v171, %v155
  %v220 = vpack.c.b16 %v172, %v156
  %v221 = vpack.c.b16 %v173, %v157
  %v222 = vpack.c.b16 %v174, %v158
  %v223 = vpack.c.b16 %v175, %v159
  %v224 = vpack.c.b16 %v176, %v160
  %v225 = vpack.c.b16 %v177, %v161
  %v226 = vpack.c.b16 %v178, %v178
  %v227 = vpack.c.b16 %v179, %v179
  %v228 = vpack.c.b16 %v180, %v180
  %v229 = vpack.c.b16 %v181, %v181
  %v230 = vpack.c.b16 %v182, %v182
  %v231 = vpack.c.b16 %v183, %v183
  %v232 = vpack.c.b16 %v184, %v184
  %v233 = vpack.c.b16 %v185, %v185
  %v234 = vpack.c.b16 %v186, %v186
  %v235 = vpack.c.b16 %v187, %v187
  %v236 = vpack.c.b16 %v188, %v188
  %v237 = vpack.c.b16 %v189, %v189
  %v238 = vpack.c.b16 %v190, %v190
  %v239 = vpack.c.b16 %v191, %v191
  %v240 = vpack.c.b16 %v192, %v192
  %v241 = vpack.c.b16 %v193, %v193
  %vm274 = vcmask 293888
  %v276 = vsel %vm274, %v27, 0
  %vm278 = vcmask 1041408
  %v280 = vsel %vm278, %v226, 0
  %v283 = vsel %vm278, %v227, 0
  %v286 = vsel %vm278, %v228, 0
  %v289 = vsel %vm278, %v229, 0
  %v292 = vsel %vm278, %v230, 0
  %v295 = vsel %vm278, %v231, 0
  %v298 = vsel %vm278, %v232, 0
  %v301 = vsel %vm278, %v233, 0
  %v304 = vsel %vm278, %v234, 0
  %v307 = vsel %vm278, %v235, 0
  %v310 = vsel %vm278, %v236, 0
  %v313 = vsel %vm278, %v237, 0
  %v316 = vsel %vm278, %v238, 0
  %v319 = vsel %vm278, %v239, 0
  %v322 = vsel %vm278, %v240, 0
  %v325 = vsel %vm278, %v241, 0
  %327 = vmatprep.subr.bf16.mxu0 %v195
  %328 = vmatpush1.bf16.msra.mxu0 %v194
  %329 = vmatprep.subr.bf16.mxu0 %v211
  %330 = vmatpush1.bf16.msra.mxu0 %v210
  %331 = vmatprep.subr.bf16.mxu0 %v283
  %332 = vmatpush1.bf16.msra.mxu0 %v280
  %333 = vmatprep.subr.bf16.mxu0 0
  %334 = vmatpush1.bf16.msra.mxu0 0
  %335 = vmatprep.subr.bf16.mxu0 0
  %336 = vmatpush1.bf16.msra.mxu0 0
  %337 = vmatprep.subr.bf16.mxu0 0
  %338 = vmatpush1.bf16.msra.mxu0 0
  %339 = vmatprep.subr.bf16.mxu0 0
  %340 = vmatpush1.bf16.msra.mxu0 0
  %341 = vmatprep.subr.bf16.mxu0 0
  %342 = vmatpush1.bf16.msra.mxu0 0
  %343 = vmatprep.subr.bf16.mxu0 0
  %344 = vmatpush1.bf16.msra.mxu0 0
  %345 = vmatprep.subr.bf16.mxu0 0
  %346 = vmatpush1.bf16.msra.mxu0 0
  %347 = vmatprep.subr.bf16.mxu0 0
  %348 = vmatpush1.bf16.msra.mxu0 0
  %349 = vmatprep.subr.bf16.mxu0 0
  %350 = vmatpush1.bf16.msra.mxu0 0
  %351 = vmatprep.subr.bf16.mxu0 0
  %352 = vmatpush1.bf16.msra.mxu0 0
  %353 = vmatprep.subr.bf16.mxu0 0
  %354 = vmatpush1.bf16.msra.mxu0 0
  %355 = vmatprep.subr.bf16.mxu0 0
  %356 = vmatpush1.bf16.msra.mxu0 0
  %357 = vmatprep.subr.bf16.mxu0 0
  %358 = vmatpush1.bf16.msra.mxu0 0
  %359 = vmatprep.mubr.bf16.mxu0 0
  %360 = vmatmul.mubr.bf16.gmra.mrb[0].mxu0 %v276
  %v361 = vpop.f32.mrb[0].mxu0
  %v362 = vadd.f32 %v72, %v361
  %v363 = vpop.f32.mrb[0].mxu0
  %v364 = vadd.f32 %v72, %v363
  %v365 = vpop.f32.mrb[0].mxu0
  %v366 = vpop.f32.mrb[0].mxu0
  %367 = vdwg.mxu0
  %368 = vmatprep.subr.bf16.mxu0 %v197
  %369 = vmatpush1.bf16.msra.mxu0 %v196
  %370 = vmatprep.subr.bf16.mxu0 %v213
  %371 = vmatpush1.bf16.msra.mxu0 %v212
  %372 = vmatprep.subr.bf16.mxu0 %v289
  %373 = vmatpush1.bf16.msra.mxu0 %v286
  %374 = vmatprep.subr.bf16.mxu0 0
  %375 = vmatpush1.bf16.msra.mxu0 0
  %376 = vmatprep.subr.bf16.mxu0 0
  %377 = vmatpush1.bf16.msra.mxu0 0
  %378 = vmatprep.subr.bf16.mxu0 0
  %379 = vmatpush1.bf16.msra.mxu0 0
  %380 = vmatprep.subr.bf16.mxu0 0
  %381 = vmatpush1.bf16.msra.mxu0 0
  %382 = vmatprep.subr.bf16.mxu0 0
  %383 = vmatpush1.bf16.msra.mxu0 0
  %384 = vmatprep.subr.bf16.mxu0 0
  %385 = vmatpush1.bf16.msra.mxu0 0
  %386 = vmatprep.subr.bf16.mxu0 0
  %387 = vmatpush1.bf16.msra.mxu0 0
  %388 = vmatprep.subr.bf16.mxu0 0
  %389 = vmatpush1.bf16.msra.mxu0 0
  %390 = vmatprep.subr.bf16.mxu0 0
  %391 = vmatpush1.bf16.msra.mxu0 0
  %392 = vmatprep.subr.bf16.mxu0 0
  %393 = vmatpush1.bf16.msra.mxu0 0
  %394 = vmatprep.subr.bf16.mxu0 0
  %395 = vmatpush1.bf16.msra.mxu0 0
  %396 = vmatprep.subr.bf16.mxu0 0
  %397 = vmatpush1.bf16.msra.mxu0 0
  %398 = vmatprep.subr.bf16.mxu0 0
  %399 = vmatpush1.bf16.msra.mxu0 0
  %400 = vmatprep.mubr.bf16.mxu0 0
  %401 = vmatmul.mubr.bf16.gmra.mrb[0].mxu0 %v276
  %v402 = vpop.f32.mrb[0].mxu0
  %v403 = vadd.f32 %v72, %v402
  %v404 = vpop.f32.mrb[0].mxu0
  %v405 = vadd.f32 %v72, %v404
  %v406 = vpop.f32.mrb[0].mxu0
  %v407 = vpop.f32.mrb[0].mxu0
  %408 = vdwg.mxu0
  %409 = vmatprep.subr.bf16.mxu0 %v199
  %410 = vmatpush1.bf16.msra.mxu0 %v198
  %411 = vmatprep.subr.bf16.mxu0 %v215
  %412 = vmatpush1.bf16.msra.mxu0 %v214
  %413 = vmatprep.subr.bf16.mxu0 %v295
  %414 = vmatpush1.bf16.msra.mxu0 %v292
  %415 = vmatprep.subr.bf16.mxu0 0
  %416 = vmatpush1.bf16.msra.mxu0 0
  %417 = vmatprep.subr.bf16.mxu0 0
  %418 = vmatpush1.bf16.msra.mxu0 0
  %419 = vmatprep.subr.bf16.mxu0 0
  %420 = vmatpush1.bf16.msra.mxu0 0
  %421 = vmatprep.subr.bf16.mxu0 0
  %422 = vmatpush1.bf16.msra.mxu0 0
  %423 = vmatprep.subr.bf16.mxu0 0
  %424 = vmatpush1.bf16.msra.mxu0 0
  %425 = vmatprep.subr.bf16.mxu0 0
  %426 = vmatpush1.bf16.msra.mxu0 0
  %427 = vmatprep.subr.bf16.mxu0 0
  %428 = vmatpush1.bf16.msra.mxu0 0
  %429 = vmatprep.subr.bf16.mxu0 0
  %430 = vmatpush1.bf16.msra.mxu0 0
  %431 = vmatprep.subr.bf16.mxu0 0
  %432 = vmatpush1.bf16.msra.mxu0 0
  %433 = vmatprep.subr.bf16.mxu0 0
  %434 = vmatpush1.bf16.msra.mxu0 0
  %435 = vmatprep.subr.bf16.mxu0 0
  %436 = vmatpush1.bf16.msra.mxu0 0
  %437 = vmatprep.subr.bf16.mxu0 0
  %438 = vmatpush1.bf16.msra.mxu0 0
  %439 = vmatprep.subr.bf16.mxu0 0
  %440 = vmatpush1.bf16.msra.mxu0 0
  %441 = vmatprep.mubr.bf16.mxu0 0
  %442 = vmatmul.mubr.bf16.gmra.mrb[0].mxu0 %v276
  %v443 = vpop.f32.mrb[0].mxu0
  %v444 = vadd.f32 %v72, %v443
  %v445 = vpop.f32.mrb[0].mxu0
  %v446 = vadd.f32 %v72, %v445
  %v447 = vpop.f32.mrb[0].mxu0
  %v448 = vpop.f32.mrb[0].mxu0
  %449 = vdwg.mxu0
  %450 = vmatprep.subr.bf16.mxu0 %v201
  %451 = vmatpush1.bf16.msra.mxu0 %v200
  %452 = vmatprep.subr.bf16.mxu0 %v217
  %453 = vmatpush1.bf16.msra.mxu0 %v216
  %454 = vmatprep.subr.bf16.mxu0 %v301
  %455 = vmatpush1.bf16.msra.mxu0 %v298
  %456 = vmatprep.subr.bf16.mxu0 0
  %457 = vmatpush1.bf16.msra.mxu0 0
  %458 = vmatprep.subr.bf16.mxu0 0
  %459 = vmatpush1.bf16.msra.mxu0 0
  %460 = vmatprep.subr.bf16.mxu0 0
  %461 = vmatpush1.bf16.msra.mxu0 0
  %462 = vmatprep.subr.bf16.mxu0 0
  %463 = vmatpush1.bf16.msra.mxu0 0
  %464 = vmatprep.subr.bf16.mxu0 0
  %465 = vmatpush1.bf16.msra.mxu0 0
  %466 = vmatprep.subr.bf16.mxu0 0
  %467 = vmatpush1.bf16.msra.mxu0 0
  %468 = vmatprep.subr.bf16.mxu0 0
  %469 = vmatpush1.bf16.msra.mxu0 0
  %470 = vmatprep.subr.bf16.mxu0 0
  %471 = vmatpush1.bf16.msra.mxu0 0
  %472 = vmatprep.subr.bf16.mxu0 0
  %473 = vmatpush1.bf16.msra.mxu0 0
  %474 = vmatprep.subr.bf16.mxu0 0
  %475 = vmatpush1.bf16.msra.mxu0 0
  %476 = vmatprep.subr.bf16.mxu0 0
  %477 = vmatpush1.bf16.msra.mxu0 0
  %478 = vmatprep.subr.bf16.mxu0 0
  %479 = vmatpush1.bf16.msra.mxu0 0
  %480 = vmatprep.subr.bf16.mxu0 0
  %481 = vmatpush1.bf16.msra.mxu0 0
  %482 = vmatprep.mubr.bf16.mxu0 0
  %483 = vmatmul.mubr.bf16.gmra.mrb[0].mxu0 %v276
  %v484 = vpop.f32.mrb[0].mxu0
  %v485 = vadd.f32 %v72, %v484
  %v486 = vpop.f32.mrb[0].mxu0
  %v487 = vadd.f32 %v72, %v486
  %v488 = vpop.f32.mrb[0].mxu0
  %v489 = vpop.f32.mrb[0].mxu0
  %490 = vdwg.mxu0
  %491 = vmatprep.subr.bf16.mxu0 %v203
  %492 = vmatpush1.bf16.msra.mxu0 %v202
  %493 = vmatprep.subr.bf16.mxu0 %v219
  %494 = vmatpush1.bf16.msra.mxu0 %v218
  %495 = vmatprep.subr.bf16.mxu0 %v307
  %496 = vmatpush1.bf16.msra.mxu0 %v304
  %497 = vmatprep.subr.bf16.mxu0 0
  %498 = vmatpush1.bf16.msra.mxu0 0
  %499 = vmatprep.subr.bf16.mxu0 0
  %500 = vmatpush1.bf16.msra.mxu0 0
  %501 = vmatprep.subr.bf16.mxu0 0
  %502 = vmatpush1.bf16.msra.mxu0 0
  %503 = vmatprep.subr.bf16.mxu0 0
  %504 = vmatpush1.bf16.msra.mxu0 0
  %505 = vmatprep.subr.bf16.mxu0 0
  %506 = vmatpush1.bf16.msra.mxu0 0
  %507 = vmatprep.subr.bf16.mxu0 0
  %508 = vmatpush1.bf16.msra.mxu0 0
  %509 = vmatprep.subr.bf16.mxu0 0
  %510 = vmatpush1.bf16.msra.mxu0 0
  %511 = vmatprep.subr.bf16.mxu0 0
  %512 = vmatpush1.bf16.msra.mxu0 0
  %513 = vmatprep.subr.bf16.mxu0 0
  %514 = vmatpush1.bf16.msra.mxu0 0
  %515 = vmatprep.subr.bf16.mxu0 0
  %516 = vmatpush1.bf16.msra.mxu0 0
  %517 = vmatprep.subr.bf16.mxu0 0
  %518 = vmatpush1.bf16.msra.mxu0 0
  %519 = vmatprep.subr.bf16.mxu0 0
  %520 = vmatpush1.bf16.msra.mxu0 0
  %521 = vmatprep.subr.bf16.mxu0 0
  %522 = vmatpush1.bf16.msra.mxu0 0
  %523 = vmatprep.mubr.bf16.mxu0 0
  %524 = vmatmul.mubr.bf16.gmra.mrb[0].mxu0 %v276
  %v525 = vpop.f32.mrb[0].mxu0
  %v526 = vadd.f32 %v72, %v525
  %v527 = vpop.f32.mrb[0].mxu0
  %v528 = vadd.f32 %v72, %v527
  %v529 = vpop.f32.mrb[0].mxu0
  %v530 = vpop.f32.mrb[0].mxu0
  %531 = vdwg.mxu0
  %532 = vmatprep.subr.bf16.mxu0 %v205
  %533 = vmatpush1.bf16.msra.mxu0 %v204
  %534 = vmatprep.subr.bf16.mxu0 %v221
  %535 = vmatpush1.bf16.msra.mxu0 %v220
  %536 = vmatprep.subr.bf16.mxu0 %v313
  %537 = vmatpush1.bf16.msra.mxu0 %v310
  %538 = vmatprep.subr.bf16.mxu0 0
  %539 = vmatpush1.bf16.msra.mxu0 0
  %540 = vmatprep.subr.bf16.mxu0 0
  %541 = vmatpush1.bf16.msra.mxu0 0
  %542 = vmatprep.subr.bf16.mxu0 0
  %543 = vmatpush1.bf16.msra.mxu0 0
  %544 = vmatprep.subr.bf16.mxu0 0
  %545 = vmatpush1.bf16.msra.mxu0 0
  %546 = vmatprep.subr.bf16.mxu0 0
  %547 = vmatpush1.bf16.msra.mxu0 0
  %548 = vmatprep.subr.bf16.mxu0 0
  %549 = vmatpush1.bf16.msra.mxu0 0
  %550 = vmatprep.subr.bf16.mxu0 0
  %551 = vmatpush1.bf16.msra.mxu0 0
  %552 = vmatprep.subr.bf16.mxu0 0
  %553 = vmatpush1.bf16.msra.mxu0 0
  %554 = vmatprep.subr.bf16.mxu0 0
  %555 = vmatpush1.bf16.msra.mxu0 0
  %556 = vmatprep.subr.bf16.mxu0 0
  %557 = vmatpush1.bf16.msra.mxu0 0
  %558 = vmatprep.subr.bf16.mxu0 0
  %559 = vmatpush1.bf16.msra.mxu0 0
  %560 = vmatprep.subr.bf16.mxu0 0
  %561 = vmatpush1.bf16.msra.mxu0 0
  %562 = vmatprep.subr.bf16.mxu0 0
  %563 = vmatpush1.bf16.msra.mxu0 0
  %564 = vmatprep.mubr.bf16.mxu0 0
  %565 = vmatmul.mubr.bf16.gmra.mrb[0].mxu0 %v276
  %v566 = vpop.f32.mrb[0].mxu0
  %v567 = vadd.f32 %v72, %v566
  %v568 = vpop.f32.mrb[0].mxu0
  %v569 = vadd.f32 %v72, %v568
  %v570 = vpop.f32.mrb[0].mxu0
  %v571 = vpop.f32.mrb[0].mxu0
  %572 = vdwg.mxu0
  %573 = vmatprep.subr.bf16.mxu0 %v207
  %574 = vmatpush1.bf16.msra.mxu0 %v206
  %575 = vmatprep.subr.bf16.mxu0 %v223
  %576 = vmatpush1.bf16.msra.mxu0 %v222
  %577 = vmatprep.subr.bf16.mxu0 %v319
  %578 = vmatpush1.bf16.msra.mxu0 %v316
  %579 = vmatprep.subr.bf16.mxu0 0
  %580 = vmatpush1.bf16.msra.mxu0 0
  %581 = vmatprep.subr.bf16.mxu0 0
  %582 = vmatpush1.bf16.msra.mxu0 0
  %583 = vmatprep.subr.bf16.mxu0 0
  %584 = vmatpush1.bf16.msra.mxu0 0
  %585 = vmatprep.subr.bf16.mxu0 0
  %586 = vmatpush1.bf16.msra.mxu0 0
  %587 = vmatprep.subr.bf16.mxu0 0
  %588 = vmatpush1.bf16.msra.mxu0 0
  %589 = vmatprep.subr.bf16.mxu0 0
  %590 = vmatpush1.bf16.msra.mxu0 0
  %591 = vmatprep.subr.bf16.mxu0 0
  %592 = vmatpush1.bf16.msra.mxu0 0
  %593 = vmatprep.subr.bf16.mxu0 0
  %594 = vmatpush1.bf16.msra.mxu0 0
  %595 = vmatprep.subr.bf16.mxu0 0
  %596 = vmatpush1.bf16.msra.mxu0 0
  %597 = vmatprep.subr.bf16.mxu0 0
  %598 = vmatpush1.bf16.msra.mxu0 0
  %599 = vmatprep.subr.bf16.mxu0 0
  %600 = vmatpush1.bf16.msra.mxu0 0
  %601 = vmatprep.subr.bf16.mxu0 0
  %602 = vmatpush1.bf16.msra.mxu0 0
  %603 = vmatprep.subr.bf16.mxu0 0
  %604 = vmatpush1.bf16.msra.mxu0 0
  %605 = vmatprep.mubr.bf16.mxu0 0
  %606 = vmatmul.mubr.bf16.gmra.mrb[0].mxu0 %v276
  %v607 = vpop.f32.mrb[0].mxu0
  %v608 = vadd.f32 %v72, %v607
  %v609 = vpop.f32.mrb[0].mxu0
  %v610 = vadd.f32 %v72, %v609
  %v611 = vpop.f32.mrb[0].mxu0
  %v612 = vpop.f32.mrb[0].mxu0
  %613 = vdwg.mxu0
  %614 = vmatprep.subr.bf16.mxu0 %v209
  %615 = vmatpush1.bf16.msra.mxu0 %v208
  %616 = vmatprep.subr.bf16.mxu0 %v225
  %617 = vmatpush1.bf16.msra.mxu0 %v224
  %618 = vmatprep.subr.bf16.mxu0 %v325
  %619 = vmatpush1.bf16.msra.mxu0 %v322
  %620 = vmatprep.subr.bf16.mxu0 0
  %621 = vmatpush1.bf16.msra.mxu0 0
  %622 = vmatprep.subr.bf16.mxu0 0
  %623 = vmatpush1.bf16.msra.mxu0 0
  %624 = vmatprep.subr.bf16.mxu0 0
  %625 = vmatpush1.bf16.msra.mxu0 0
  %626 = vmatprep.subr.bf16.mxu0 0
  %627 = vmatpush1.bf16.msra.mxu0 0
  %628 = vmatprep.subr.bf16.mxu0 0
  %629 = vmatpush1.bf16.msra.mxu0 0
  %630 = vmatprep.subr.bf16.mxu0 0
  %631 = vmatpush1.bf16.msra.mxu0 0
  %632 = vmatprep.subr.bf16.mxu0 0
  %633 = vmatpush1.bf16.msra.mxu0 0
  %634 = vmatprep.subr.bf16.mxu0 0
  %635 = vmatpush1.bf16.msra.mxu0 0
  %636 = vmatprep.subr.bf16.mxu0 0
  %637 = vmatpush1.bf16.msra.mxu0 0
  %638 = vmatprep.subr.bf16.mxu0 0
  %639 = vmatpush1.bf16.msra.mxu0 0
  %640 = vmatprep.subr.bf16.mxu0 0
  %641 = vmatpush1.bf16.msra.mxu0 0
  %642 = vmatprep.subr.bf16.mxu0 0
  %643 = vmatpush1.bf16.msra.mxu0 0
  %644 = vmatprep.subr.bf16.mxu0 0
  %645 = vmatpush1.bf16.msra.mxu0 0
  %646 = vmatprep.mubr.bf16.mxu0 0
  %647 = vmatmul.mubr.bf16.gmra.mrb[0].mxu0 %v276
  %v648 = vpop.f32.mrb[0].mxu0
  %v649 = vadd.f32 %v72, %v648
  %v650 = vpop.f32.mrb[0].mxu0
  %v651 = vadd.f32 %v72, %v650
  %v652 = vpop.f32.mrb[0].mxu0
  %v653 = vpop.f32.mrb[0].mxu0
  %654 = vdwg.mxu0
  %v655 = vmax.f32 %v362, 0.0
  %v656 = vmax.f32 %v364, 0.0
  %v657 = vmax.f32 %v403, 0.0
  %v658 = vmax.f32 %v405, 0.0
  %v659 = vmax.f32 %v444, 0.0
  %v660 = vmax.f32 %v446, 0.0
  %v661 = vmax.f32 %v485, 0.0
  %v662 = vmax.f32 %v487, 0.0
  %v663 = vmax.f32 %v526, 0.0
  %v664 = vmax.f32 %v528, 0.0
  %v665 = vmax.f32 %v567, 0.0
  %v666 = vmax.f32 %v569, 0.0
  %v667 = vmax.f32 %v608, 0.0
  %v668 = vmax.f32 %v610, 0.0
  %v669 = vmax.f32 %v649, 0.0
  %v670 = vmax.f32 %v651, 0.0
  %v671 = vcombine.low %v655, %v659
  %v672 = vcombine.high %v655, %v659
  %v674 = vunpack.c.l.s4 1983009808
  %v675 = vunpack.c.0.s8 %v674
  %v676 = vlaneseq
  %v677 = vshrl.u32 %v676, 7
  %v678 = vsub.s32 %v675, %v677
  %v679 = vrot.slane %v671, %v678
  %v681 = vunpack.c.l.s4 1983009808
  %v682 = vunpack.c.0.s8 %v681
  %v683 = vlaneseq
  %v684 = vshrl.u32 %v683, 7
  %v685 = vsub.s32 %v682, %v684
  %v686 = vrot.slane %v672, %v685
  %v687 = vcombine.low %v657, %v661
  %v688 = vcombine.high %v657, %v661
  %v690 = vunpack.c.l.s4 1983009808
  %v691 = vunpack.c.0.s8 %v690
  %v692 = vlaneseq
  %v693 = vshrl.u32 %v692, 7
  %v694 = vsub.s32 %v691, %v693
  %v695 = vrot.slane %v687, %v694
  %v697 = vunpack.c.l.s4 1983009808
  %v698 = vunpack.c.0.s8 %v697
  %v699 = vlaneseq
  %v700 = vshrl.u32 %v699, 7
  %v701 = vsub.s32 %v698, %v700
  %v702 = vrot.slane %v688, %v701
  %v703 = vcombine.low %v663, %v667
  %v704 = vcombine.high %v663, %v667
  %v706 = vunpack.c.l.s4 1983009808
  %v707 = vunpack.c.0.s8 %v706
  %v708 = vlaneseq
  %v709 = vshrl.u32 %v708, 7
  %v710 = vsub.s32 %v707, %v709
  %v711 = vrot.slane %v703, %v710
  %v713 = vunpack.c.l.s4 1983009808
  %v714 = vunpack.c.0.s8 %v713
  %v715 = vlaneseq
  %v716 = vshrl.u32 %v715, 7
  %v717 = vsub.s32 %v714, %v716
  %v718 = vrot.slane %v704, %v717
  %v719 = vcombine.low %v665, %v669
  %v720 = vcombine.high %v665, %v669
  %v722 = vunpack.c.l.s4 1983009808
  %v723 = vunpack.c.0.s8 %v722
  %v724 = vlaneseq
  %v725 = vshrl.u32 %v724, 7
  %v726 = vsub.s32 %v723, %v725
  %v727 = vrot.slane %v719, %v726
  %v729 = vunpack.c.l.s4 1983009808
  %v730 = vunpack.c.0.s8 %v729
  %v731 = vlaneseq
  %v732 = vshrl.u32 %v731, 7
  %v733 = vsub.s32 %v730, %v732
  %v734 = vrot.slane %v720, %v733
  %v735 = vcombine.low %v679, %v695
  %v736 = vcombine.high %v679, %v695
  %v738 = vunpack.c.l.s4 1934713408
  %v739 = vunpack.c.0.s8 %v738
  %v740 = vlaneseq
  %v741 = vshrl.u32 %v740, 7
  %v742 = vsub.s32 %v739, %v741
  %v743 = vrot.slane %v735, %v742
  %v745 = vunpack.c.l.s4 1934713408
  %v746 = vunpack.c.0.s8 %v745
  %v747 = vlaneseq
  %v748 = vshrl.u32 %v747, 7
  %v749 = vsub.s32 %v746, %v748
  %v750 = vrot.slane %v736, %v749
  %v751 = vcombine.low %v686, %v702
  %v752 = vcombine.high %v686, %v702
  %v754 = vunpack.c.l.s4 1934713408
  %v755 = vunpack.c.0.s8 %v754
  %v756 = vlaneseq
  %v757 = vshrl.u32 %v756, 7
  %v758 = vsub.s32 %v755, %v757
  %v759 = vrot.slane %v751, %v758
  %v761 = vunpack.c.l.s4 1934713408
  %v762 = vunpack.c.0.s8 %v761
  %v763 = vlaneseq
  %v764 = vshrl.u32 %v763, 7
  %v765 = vsub.s32 %v762, %v764
  %v766 = vrot.slane %v752, %v765
  %v767 = vcombine.low %v711, %v727
  %v768 = vcombine.high %v711, %v727
  %v770 = vunpack.c.l.s4 1934713408
  %v771 = vunpack.c.0.s8 %v770
  %v772 = vlaneseq
  %v773 = vshrl.u32 %v772, 7
  %v774 = vsub.s32 %v771, %v773
  %v775 = vrot.slane %v767, %v774
  %v777 = vunpack.c.l.s4 1934713408
  %v778 = vunpack.c.0.s8 %v777
  %v779 = vlaneseq
  %v780 = vshrl.u32 %v779, 7
  %v781 = vsub.s32 %v778, %v780
  %v782 = vrot.slane %v768, %v781
  %v783 = vcombine.low %v718, %v734
  %v784 = vcombine.high %v718, %v734
  %v786 = vunpack.c.l.s4 1934713408
  %v787 = vunpack.c.0.s8 %v786
  %v788 = vlaneseq
  %v789 = vshrl.u32 %v788, 7
  %v790 = vsub.s32 %v787, %v789
  %v791 = vrot.slane %v783, %v790
  %v793 = vunpack.c.l.s4 1934713408
  %v794 = vunpack.c.0.s8 %v793
  %v795 = vlaneseq
  %v796 = vshrl.u32 %v795, 7
  %v797 = vsub.s32 %v794, %v796
  %v798 = vrot.slane %v784, %v797
  %v799 = vcombine.low %v743, %v775
  %v800 = vcombine.high %v743, %v775
  %v801 = vcombine.low %v750, %v782
  %v802 = vcombine.high %v750, %v782
  %v803 = vcombine.low %v759, %v791
  %v804 = vcombine.high %v759, %v791
  %v805 = vcombine.low %v766, %v798
  %v806 = vcombine.high %v766, %v798
  %v807 = vcombine.low %v656, %v660
  %v808 = vcombine.high %v656, %v660
  %v810 = vunpack.c.l.s4 1983009808
  %v811 = vunpack.c.0.s8 %v810
  %v812 = vlaneseq
  %v813 = vshrl.u32 %v812, 7
  %v814 = vsub.s32 %v811, %v813
  %v815 = vrot.slane %v807, %v814
  %v817 = vunpack.c.l.s4 1983009808
  %v818 = vunpack.c.0.s8 %v817
  %v819 = vlaneseq
  %v820 = vshrl.u32 %v819, 7
  %v821 = vsub.s32 %v818, %v820
  %v822 = vrot.slane %v808, %v821
  %v823 = vcombine.low %v658, %v662
  %v824 = vcombine.high %v658, %v662
  %v826 = vunpack.c.l.s4 1983009808
  %v827 = vunpack.c.0.s8 %v826
  %v828 = vlaneseq
  %v829 = vshrl.u32 %v828, 7
  %v830 = vsub.s32 %v827, %v829
  %v831 = vrot.slane %v823, %v830
  %v833 = vunpack.c.l.s4 1983009808
  %v834 = vunpack.c.0.s8 %v833
  %v835 = vlaneseq
  %v836 = vshrl.u32 %v835, 7
  %v837 = vsub.s32 %v834, %v836
  %v838 = vrot.slane %v824, %v837
  %v839 = vcombine.low %v664, %v668
  %v840 = vcombine.high %v664, %v668
  %v842 = vunpack.c.l.s4 1983009808
  %v843 = vunpack.c.0.s8 %v842
  %v844 = vlaneseq
  %v845 = vshrl.u32 %v844, 7
  %v846 = vsub.s32 %v843, %v845
  %v847 = vrot.slane %v839, %v846
  %v849 = vunpack.c.l.s4 1983009808
  %v850 = vunpack.c.0.s8 %v849
  %v851 = vlaneseq
  %v852 = vshrl.u32 %v851, 7
  %v853 = vsub.s32 %v850, %v852
  %v854 = vrot.slane %v840, %v853
  %v855 = vcombine.low %v666, %v670
  %v856 = vcombine.high %v666, %v670
  %v858 = vunpack.c.l.s4 1983009808
  %v859 = vunpack.c.0.s8 %v858
  %v860 = vlaneseq
  %v861 = vshrl.u32 %v860, 7
  %v862 = vsub.s32 %v859, %v861
  %v863 = vrot.slane %v855, %v862
  %v865 = vunpack.c.l.s4 1983009808
  %v866 = vunpack.c.0.s8 %v865
  %v867 = vlaneseq
  %v868 = vshrl.u32 %v867, 7
  %v869 = vsub.s32 %v866, %v868
  %v870 = vrot.slane %v856, %v869
  %v871 = vcombine.low %v815, %v831
  %v872 = vcombine.high %v815, %v831
  %v874 = vunpack.c.l.s4 1934713408
  %v875 = vunpack.c.0.s8 %v874
  %v876 = vlaneseq
  %v877 = vshrl.u32 %v876, 7
  %v878 = vsub.s32 %v875, %v877
  %v879 = vrot.slane %v871, %v878
  %v881 = vunpack.c.l.s4 1934713408
  %v882 = vunpack.c.0.s8 %v881
  %v883 = vlaneseq
  %v884 = vshrl.u32 %v883, 7
  %v885 = vsub.s32 %v882, %v884
  %v886 = vrot.slane %v872, %v885
  %v887 = vcombine.low %v822, %v838
  %v888 = vcombine.high %v822, %v838
  %v890 = vunpack.c.l.s4 1934713408
  %v891 = vunpack.c.0.s8 %v890
  %v892 = vlaneseq
  %v893 = vshrl.u32 %v892, 7
  %v894 = vsub.s32 %v891, %v893
  %v895 = vrot.slane %v887, %v894
  %v897 = vunpack.c.l.s4 1934713408
  %v898 = vunpack.c.0.s8 %v897
  %v899 = vlaneseq
  %v900 = vshrl.u32 %v899, 7
  %v901 = vsub.s32 %v898, %v900
  %v902 = vrot.slane %v888, %v901
  %v903 = vcombine.low %v847, %v863
  %v904 = vcombine.high %v847, %v863
  %v906 = vunpack.c.l.s4 1934713408
  %v907 = vunpack.c.0.s8 %v906
  %v908 = vlaneseq
  %v909 = vshrl.u32 %v908, 7
  %v910 = vsub.s32 %v907, %v909
  %v911 = vrot.slane %v903, %v910
  %v913 = vunpack.c.l.s4 1934713408
  %v914 = vunpack.c.0.s8 %v913
  %v915 = vlaneseq
  %v916 = vshrl.u32 %v915, 7
  %v917 = vsub.s32 %v914, %v916
  %v918 = vrot.slane %v904, %v917
  %v919 = vcombine.low %v854, %v870
  %v920 = vcombine.high %v854, %v870
  %v922 = vunpack.c.l.s4 1934713408
  %v923 = vunpack.c.0.s8 %v922
  %v924 = vlaneseq
  %v925 = vshrl.u32 %v924, 7
  %v926 = vsub.s32 %v923, %v925
  %v927 = vrot.slane %v919, %v926
  %v929 = vunpack.c.l.s4 1934713408
  %v930 = vunpack.c.0.s8 %v929
  %v931 = vlaneseq
  %v932 = vshrl.u32 %v931, 7
  %v933 = vsub.s32 %v930, %v932
  %v934 = vrot.slane %v920, %v933
  %v935 = vcombine.low %v879, %v911
  %v936 = vcombine.high %v879, %v911
  %v937 = vcombine.low %v886, %v918
  %v938 = vcombine.high %v886, %v918
  %v939 = vcombine.low %v895, %v927
  %v940 = vcombine.high %v895, %v927
  %v941 = vcombine.low %v902, %v934
  %v942 = vcombine.high %v902, %v934
  %v943 = vld [vmem:[%s3] sm:$0xff]
  %v944 = vld [vmem:[%s3 + $0x8] sm:$0xff]
  %v945 = vld [vmem:[%s3 + $0x10] sm:$0xff]
  %v946 = vld [vmem:[%s3 + $0x18] sm:$0xff]
  %v947 = vld [vmem:[%s3 + $0x20] sm:$0xff]
  %v948 = vld [vmem:[%s3 + $0x28] sm:$0xff]
  %v949 = vld [vmem:[%s3 + $0x30] sm:$0xff]
  %v950 = vld [vmem:[%s3 + $0x38] sm:$0xff]
  %v951 = vld [vmem:[%s3 + $0x40] sm:$0xff]
  %v952 = vld [vmem:[%s3 + $0x48] sm:$0xff]
  %v953 = vld [vmem:[%s3 + $0x50] sm:$0xff]
  %v954 = vld [vmem:[%s3 + $0x58] sm:$0xff]
  %v955 = vld [vmem:[%s3 + $0x60] sm:$0xff]
  %v956 = vld [vmem:[%s3 + $0x68] sm:$0xff]
  %v957 = vld [vmem:[%s3 + $0x70] sm:$0xff]
  %v958 = vld [vmem:[%s3 + $0x78] sm:$0xff]
  %v959 = vld [vmem:[%s3 + $0x80] sm:$0xff]
  %v960 = vld [vmem:[%s3 + $0x88] sm:$0xff]
  %v961 = vld [vmem:[%s3 + $0x90] sm:$0xff]
  %v962 = vld [vmem:[%s3 + $0x98] sm:$0xff]
  %v963 = vld [vmem:[%s3 + $0xa0] sm:$0xff]
  %v964 = vld [vmem:[%s3 + $0xa8] sm:$0xff]
  %v965 = vld [vmem:[%s3 + $0xb0] sm:$0xff]
  %v966 = vld [vmem:[%s3 + $0xb8] sm:$0xff]
  %v967 = vld [vmem:[%s3 + $0xc0] sm:$0xff]
  %v968 = vld [vmem:[%s3 + $0xc8] sm:$0xff]
  %v969 = vld [vmem:[%s3 + $0xd0] sm:$0xff]
  %v970 = vld [vmem:[%s3 + $0xd8] sm:$0xff]
  %v971 = vld [vmem:[%s3 + $0xe0] sm:$0xff]
  %v972 = vld [vmem:[%s3 + $0xe8] sm:$0xff]
  %v973 = vld [vmem:[%s3 + $0xf0] sm:$0xff]
  %v974 = vld [vmem:[%s3 + $0xf8] sm:$0xff]
  %s975 = scalar_lea.vmem %s3, 256
  %v976 = vld [vmem:[%s975] sm:$0xff]
  %v977 = vld [vmem:[%s975 + $0x8] sm:$0xff]
  %v978 = vld [vmem:[%s975 + $0x10] sm:$0xff]
  %v979 = vld [vmem:[%s975 + $0x18] sm:$0xff]
  %v980 = vld [vmem:[%s975 + $0x20] sm:$0xff]
  %v981 = vld [vmem:[%s975 + $0x28] sm:$0xff]
  %v982 = vld [vmem:[%s975 + $0x30] sm:$0xff]
  %v983 = vld [vmem:[%s975 + $0x38] sm:$0xff]
  %v984 = vld [vmem:[%s975 + $0x40] sm:$0xff]
  %v985 = vld [vmem:[%s975 + $0x48] sm:$0xff]
  %v986 = vld [vmem:[%s975 + $0x50] sm:$0xff]
  %v987 = vld [vmem:[%s975 + $0x58] sm:$0xff]
  %v988 = vld [vmem:[%s975 + $0x60] sm:$0xff]
  %v989 = vld [vmem:[%s975 + $0x68] sm:$0xff]
  %v990 = vld [vmem:[%s975 + $0x70] sm:$0xff]
  %v991 = vld [vmem:[%s975 + $0x78] sm:$0xff]
  %v992 = vld [vmem:[%s975 + $0x80] sm:$0xff]
  %v993 = vld [vmem:[%s975 + $0x88] sm:$0xff]
  %v994 = vld [vmem:[%s975 + $0x90] sm:$0xff]
  %v995 = vld [vmem:[%s975 + $0x98] sm:$0xff]
  %v996 = vld [vmem:[%s975 + $0xa0] sm:$0xff]
  %v997 = vld [vmem:[%s975 + $0xa8] sm:$0xff]
  %v998 = vld [vmem:[%s975 + $0xb0] sm:$0xff]
  %v999 = vld [vmem:[%s975 + $0xb8] sm:$0xff]
  %v1000 = vld [vmem:[%s975 + $0xc0] sm:$0xff]
  %v1001 = vld [vmem:[%s975 + $0xc8] sm:$0xff]
  %v1002 = vld [vmem:[%s975 + $0xd0] sm:$0xff]
  %v1003 = vld [vmem:[%s975 + $0xd8] sm:$0xff]
  %v1004 = vld [vmem:[%s975 + $0xe0] sm:$0xff]
  %v1005 = vld [vmem:[%s975 + $0xe8] sm:$0xff]
  %v1006 = vld [vmem:[%s975 + $0xf0] sm:$0xff]
  %v1007 = vld [vmem:[%s975 + $0xf8] sm:$0xff]
  %1008 = vmatprep.subr.mxu0 0.0
  %1009 = vmatpush1.msra.mxu0 %v976
  %1010 = vmatprep.subr.mxu0 0.0
  %1011 = vmatpush1.msra.mxu0 %v977
  %1012 = vmatprep.subr.mxu0 0.0
  %1013 = vmatpush1.msra.mxu0 %v978
  %1014 = vmatprep.subr.mxu0 0.0
  %1015 = vmatpush1.msra.mxu0 %v979
  %1016 = vmatprep.subr.mxu0 0.0
  %1017 = vmatpush1.msra.mxu0 %v980
  %1018 = vmatprep.subr.mxu0 0.0
  %1019 = vmatpush1.msra.mxu0 %v981
  %1020 = vmatprep.subr.mxu0 0.0
  %1021 = vmatpush1.msra.mxu0 %v982
  %1022 = vmatprep.subr.mxu0 0.0
  %1023 = vmatpush1.msra.mxu0 %v983
  %1024 = vmatprep.subr.mxu0 0.0
  %1025 = vmatpush1.msra.mxu0 %v984
  %1026 = vmatprep.subr.mxu0 0.0
  %1027 = vmatpush1.msra.mxu0 %v985
  %1028 = vmatprep.subr.mxu0 0.0
  %1029 = vmatpush1.msra.mxu0 %v986
  %1030 = vmatprep.subr.mxu0 0.0
  %1031 = vmatpush1.msra.mxu0 %v987
  %1032 = vmatprep.subr.mxu0 0.0
  %1033 = vmatpush1.msra.mxu0 %v988
  %1034 = vmatprep.subr.mxu0 0.0
  %1035 = vmatpush1.msra.mxu0 %v989
  %1036 = vmatprep.subr.mxu0 0.0
  %1037 = vmatpush1.msra.mxu0 %v990
  %1038 = vmatprep.subr.mxu0 0.0
  %1039 = vmatpush1.msra.mxu0 %v991
  %1040 = vmatprep.subr.mxu0 0.0
  %1041 = vmatpush1.msra.mxu0 %v992
  %1042 = vmatprep.subr.mxu0 0.0
  %1043 = vmatpush1.msra.mxu0 %v993
  %1044 = vmatprep.subr.mxu0 0.0
  %1045 = vmatpush1.msra.mxu0 %v994
  %1046 = vmatprep.subr.mxu0 0.0
  %1047 = vmatpush1.msra.mxu0 %v995
  %1048 = vmatprep.subr.mxu0 0.0
  %1049 = vmatpush1.msra.mxu0 %v996
  %1050 = vmatprep.subr.mxu0 0.0
  %1051 = vmatpush1.msra.mxu0 %v997
  %1052 = vmatprep.subr.mxu0 0.0
  %1053 = vmatpush1.msra.mxu0 %v998
  %1054 = vmatprep.subr.mxu0 0.0
  %1055 = vmatpush1.msra.mxu0 %v999
  %1056 = vmatprep.subr.mxu0 0.0
  %1057 = vmatpush1.msra.mxu0 %v1000
  %1058 = vmatprep.subr.mxu0 0.0
  %1059 = vmatpush1.msra.mxu0 %v1001
  %1060 = vmatprep.subr.mxu0 0.0
  %1061 = vmatpush1.msra.mxu0 %v1002
  %1062 = vmatprep.subr.mxu0 0.0
  %1063 = vmatpush1.msra.mxu0 %v1003
  %1064 = vmatprep.subr.mxu0 0.0
  %1065 = vmatpush1.msra.mxu0 %v1004
  %1066 = vmatprep.subr.mxu0 0.0
  %1067 = vmatpush1.msra.mxu0 %v1005
  %1068 = vmatprep.subr.mxu0 0.0
  %1069 = vmatpush1.msra.mxu0 %v1006
  %1070 = vmatprep.subr.mxu0 0.0
  %1071 = vmatpush1.msra.mxu0 %v1007
  %1072 = vmatprep.mubr.f32.mxu0 %v936
  %1073 = vmatmul.mubr.f32.gmra.mrb[0].mxu0 %v800
  %v1074 = vpop.f32.mrb[0].mxu0
  %v1075 = vadd.f32 0.0, %v1074
  %v1076 = vpop.f32.mrb[0].mxu0
  %1077 = vdwg.mxu0
  %1078 = vmatprep.subr.mxu0 0.0
  %1079 = vmatpush1.msra.mxu0 %v943
  %1080 = vmatprep.subr.mxu0 0.0
  %1081 = vmatpush1.msra.mxu0 %v944
  %1082 = vmatprep.subr.mxu0 0.0
  %1083 = vmatpush1.msra.mxu0 %v945
  %1084 = vmatprep.subr.mxu0 0.0
  %1085 = vmatpush1.msra.mxu0 %v946
  %1086 = vmatprep.subr.mxu0 0.0
  %1087 = vmatpush1.msra.mxu0 %v947
  %1088 = vmatprep.subr.mxu0 0.0
  %1089 = vmatpush1.msra.mxu0 %v948
  %1090 = vmatprep.subr.mxu0 0.0
  %1091 = vmatpush1.msra.mxu0 %v949
  %1092 = vmatprep.subr.mxu0 0.0
  %1093 = vmatpush1.msra.mxu0 %v950
  %1094 = vmatprep.subr.mxu0 0.0
  %1095 = vmatpush1.msra.mxu0 %v951
  %1096 = vmatprep.subr.mxu0 0.0
  %1097 = vmatpush1.msra.mxu0 %v952
  %1098 = vmatprep.subr.mxu0 0.0
  %1099 = vmatpush1.msra.mxu0 %v953
  %1100 = vmatprep.subr.mxu0 0.0
  %1101 = vmatpush1.msra.mxu0 %v954
  %1102 = vmatprep.subr.mxu0 0.0
  %1103 = vmatpush1.msra.mxu0 %v955
  %1104 = vmatprep.subr.mxu0 0.0
  %1105 = vmatpush1.msra.mxu0 %v956
  %1106 = vmatprep.subr.mxu0 0.0
  %1107 = vmatpush1.msra.mxu0 %v957
  %1108 = vmatprep.subr.mxu0 0.0
  %1109 = vmatpush1.msra.mxu0 %v958
  %1110 = vmatprep.subr.mxu0 0.0
  %1111 = vmatpush1.msra.mxu0 %v959
  %1112 = vmatprep.subr.mxu0 0.0
  %1113 = vmatpush1.msra.mxu0 %v960
  %1114 = vmatprep.subr.mxu0 0.0
  %1115 = vmatpush1.msra.mxu0 %v961
  %1116 = vmatprep.subr.mxu0 0.0
  %1117 = vmatpush1.msra.mxu0 %v962
  %1118 = vmatprep.subr.mxu0 0.0
  %1119 = vmatpush1.msra.mxu0 %v963
  %1120 = vmatprep.subr.mxu0 0.0
  %1121 = vmatpush1.msra.mxu0 %v964
  %1122 = vmatprep.subr.mxu0 0.0
  %1123 = vmatpush1.msra.mxu0 %v965
  %1124 = vmatprep.subr.mxu0 0.0
  %1125 = vmatpush1.msra.mxu0 %v966
  %1126 = vmatprep.subr.mxu0 0.0
  %1127 = vmatpush1.msra.mxu0 %v967
  %1128 = vmatprep.subr.mxu0 0.0
  %1129 = vmatpush1.msra.mxu0 %v968
  %1130 = vmatprep.subr.mxu0 0.0
  %1131 = vmatpush1.msra.mxu0 %v969
  %1132 = vmatprep.subr.mxu0 0.0
  %1133 = vmatpush1.msra.mxu0 %v970
  %1134 = vmatprep.subr.mxu0 0.0
  %1135 = vmatpush1.msra.mxu0 %v971
  %1136 = vmatprep.subr.mxu0 0.0
  %1137 = vmatpush1.msra.mxu0 %v972
  %1138 = vmatprep.subr.mxu0 0.0
  %1139 = vmatpush1.msra.mxu0 %v973
  %1140 = vmatprep.subr.mxu0 0.0
  %1141 = vmatpush1.msra.mxu0 %v974
  %1142 = vmatprep.mubr.f32.mxu0 %v935
  %1143 = vmatmul.mubr.f32.gmra.mrb[0].mxu0 %v799
  %v1144 = vpop.f32.mrb[0].mxu0
  %v1145 = vadd.f32 %v1075, %v1144
  %v1146 = vpop.f32.mrb[0].mxu0
  %1147 = vdwg.mxu0
  %s1148 = scalar_lea.vmem %s3, 512
  %v1149 = vld [vmem:[%s1148] sm:$0xff]
  %v1150 = vld [vmem:[%s1148 + $0x8] sm:$0xff]
  %v1151 = vld [vmem:[%s1148 + $0x10] sm:$0xff]
  %v1152 = vld [vmem:[%s1148 + $0x18] sm:$0xff]
  %v1153 = vld [vmem:[%s1148 + $0x20] sm:$0xff]
  %v1154 = vld [vmem:[%s1148 + $0x28] sm:$0xff]
  %v1155 = vld [vmem:[%s1148 + $0x30] sm:$0xff]
  %v1156 = vld [vmem:[%s1148 + $0x38] sm:$0xff]
  %v1157 = vld [vmem:[%s1148 + $0x40] sm:$0xff]
  %v1158 = vld [vmem:[%s1148 + $0x48] sm:$0xff]
  %v1159 = vld [vmem:[%s1148 + $0x50] sm:$0xff]
  %v1160 = vld [vmem:[%s1148 + $0x58] sm:$0xff]
  %v1161 = vld [vmem:[%s1148 + $0x60] sm:$0xff]
  %v1162 = vld [vmem:[%s1148 + $0x68] sm:$0xff]
  %v1163 = vld [vmem:[%s1148 + $0x70] sm:$0xff]
  %v1164 = vld [vmem:[%s1148 + $0x78] sm:$0xff]
  %v1165 = vld [vmem:[%s1148 + $0x80] sm:$0xff]
  %v1166 = vld [vmem:[%s1148 + $0x88] sm:$0xff]
  %v1167 = vld [vmem:[%s1148 + $0x90] sm:$0xff]
  %v1168 = vld [vmem:[%s1148 + $0x98] sm:$0xff]
  %v1169 = vld [vmem:[%s1148 + $0xa0] sm:$0xff]
  %v1170 = vld [vmem:[%s1148 + $0xa8] sm:$0xff]
  %v1171 = vld [vmem:[%s1148 + $0xb0] sm:$0xff]
  %v1172 = vld [vmem:[%s1148 + $0xb8] sm:$0xff]
  %v1173 = vld [vmem:[%s1148 + $0xc0] sm:$0xff]
  %v1174 = vld [vmem:[%s1148 + $0xc8] sm:$0xff]
  %v1175 = vld [vmem:[%s1148 + $0xd0] sm:$0xff]
  %v1176 = vld [vmem:[%s1148 + $0xd8] sm:$0xff]
  %v1177 = vld [vmem:[%s1148 + $0xe0] sm:$0xff]
  %v1178 = vld [vmem:[%s1148 + $0xe8] sm:$0xff]
  %v1179 = vld [vmem:[%s1148 + $0xf0] sm:$0xff]
  %v1180 = vld [vmem:[%s1148 + $0xf8] sm:$0xff]
  %1181 = vmatprep.subr.mxu0 0.0
  %1182 = vmatpush1.msra.mxu0 %v1149
  %1183 = vmatprep.subr.mxu0 0.0
  %1184 = vmatpush1.msra.mxu0 %v1150
  %1185 = vmatprep.subr.mxu0 0.0
  %1186 = vmatpush1.msra.mxu0 %v1151
  %1187 = vmatprep.subr.mxu0 0.0
  %1188 = vmatpush1.msra.mxu0 %v1152
  %1189 = vmatprep.subr.mxu0 0.0
  %1190 = vmatpush1.msra.mxu0 %v1153
  %1191 = vmatprep.subr.mxu0 0.0
  %1192 = vmatpush1.msra.mxu0 %v1154
  %1193 = vmatprep.subr.mxu0 0.0
  %1194 = vmatpush1.msra.mxu0 %v1155
  %1195 = vmatprep.subr.mxu0 0.0
  %1196 = vmatpush1.msra.mxu0 %v1156
  %1197 = vmatprep.subr.mxu0 0.0
  %1198 = vmatpush1.msra.mxu0 %v1157
  %1199 = vmatprep.subr.mxu0 0.0
  %1200 = vmatpush1.msra.mxu0 %v1158
  %1201 = vmatprep.subr.mxu0 0.0
  %1202 = vmatpush1.msra.mxu0 %v1159
  %1203 = vmatprep.subr.mxu0 0.0
  %1204 = vmatpush1.msra.mxu0 %v1160
  %1205 = vmatprep.subr.mxu0 0.0
  %1206 = vmatpush1.msra.mxu0 %v1161
  %1207 = vmatprep.subr.mxu0 0.0
  %1208 = vmatpush1.msra.mxu0 %v1162
  %1209 = vmatprep.subr.mxu0 0.0
  %1210 = vmatpush1.msra.mxu0 %v1163
  %1211 = vmatprep.subr.mxu0 0.0
  %1212 = vmatpush1.msra.mxu0 %v1164
  %1213 = vmatprep.subr.mxu0 0.0
  %1214 = vmatpush1.msra.mxu0 %v1165
  %1215 = vmatprep.subr.mxu0 0.0
  %1216 = vmatpush1.msra.mxu0 %v1166
  %1217 = vmatprep.subr.mxu0 0.0
  %1218 = vmatpush1.msra.mxu0 %v1167
  %1219 = vmatprep.subr.mxu0 0.0
  %1220 = vmatpush1.msra.mxu0 %v1168
  %1221 = vmatprep.subr.mxu0 0.0
  %1222 = vmatpush1.msra.mxu0 %v1169
  %1223 = vmatprep.subr.mxu0 0.0
  %1224 = vmatpush1.msra.mxu0 %v1170
  %1225 = vmatprep.subr.mxu0 0.0
  %1226 = vmatpush1.msra.mxu0 %v1171
  %1227 = vmatprep.subr.mxu0 0.0
  %1228 = vmatpush1.msra.mxu0 %v1172
  %1229 = vmatprep.subr.mxu0 0.0
  %1230 = vmatpush1.msra.mxu0 %v1173
  %1231 = vmatprep.subr.mxu0 0.0
  %1232 = vmatpush1.msra.mxu0 %v1174
  %1233 = vmatprep.subr.mxu0 0.0
  %1234 = vmatpush1.msra.mxu0 %v1175
  %1235 = vmatprep.subr.mxu0 0.0
  %1236 = vmatpush1.msra.mxu0 %v1176
  %1237 = vmatprep.subr.mxu0 0.0
  %1238 = vmatpush1.msra.mxu0 %v1177
  %1239 = vmatprep.subr.mxu0 0.0
  %1240 = vmatpush1.msra.mxu0 %v1178
  %1241 = vmatprep.subr.mxu0 0.0
  %1242 = vmatpush1.msra.mxu0 %v1179
  %1243 = vmatprep.subr.mxu0 0.0
  %1244 = vmatpush1.msra.mxu0 %v1180
  %1245 = vmatprep.mubr.f32.mxu0 %v937
  %1246 = vmatmul.mubr.f32.gmra.mrb[0].mxu0 %v801
  %v1247 = vpop.f32.mrb[0].mxu0
  %v1248 = vadd.f32 0.0, %v1247
  %v1249 = vpop.f32.mrb[0].mxu0
  %1250 = vdwg.mxu0
  %v1251 = vadd.f32 %v1145, %v1248
  %s1252 = scalar_lea.vmem %s3, 768
  %v1253 = vld [vmem:[%s1252] sm:$0xff]
  %v1254 = vld [vmem:[%s1252 + $0x8] sm:$0xff]
  %v1255 = vld [vmem:[%s1252 + $0x10] sm:$0xff]
  %v1256 = vld [vmem:[%s1252 + $0x18] sm:$0xff]
  %v1257 = vld [vmem:[%s1252 + $0x20] sm:$0xff]
  %v1258 = vld [vmem:[%s1252 + $0x28] sm:$0xff]
  %v1259 = vld [vmem:[%s1252 + $0x30] sm:$0xff]
  %v1260 = vld [vmem:[%s1252 + $0x38] sm:$0xff]
  %v1261 = vld [vmem:[%s1252 + $0x40] sm:$0xff]
  %v1262 = vld [vmem:[%s1252 + $0x48] sm:$0xff]
  %v1263 = vld [vmem:[%s1252 + $0x50] sm:$0xff]
  %v1264 = vld [vmem:[%s1252 + $0x58] sm:$0xff]
  %v1265 = vld [vmem:[%s1252 + $0x60] sm:$0xff]
  %v1266 = vld [vmem:[%s1252 + $0x68] sm:$0xff]
  %v1267 = vld [vmem:[%s1252 + $0x70] sm:$0xff]
  %v1268 = vld [vmem:[%s1252 + $0x78] sm:$0xff]
  %v1269 = vld [vmem:[%s1252 + $0x80] sm:$0xff]
  %v1270 = vld [vmem:[%s1252 + $0x88] sm:$0xff]
  %v1271 = vld [vmem:[%s1252 + $0x90] sm:$0xff]
  %v1272 = vld [vmem:[%s1252 + $0x98] sm:$0xff]
  %v1273 = vld [vmem:[%s1252 + $0xa0] sm:$0xff]
  %v1274 = vld [vmem:[%s1252 + $0xa8] sm:$0xff]
  %v1275 = vld [vmem:[%s1252 + $0xb0] sm:$0xff]
  %v1276 = vld [vmem:[%s1252 + $0xb8] sm:$0xff]
  %v1277 = vld [vmem:[%s1252 + $0xc0] sm:$0xff]
  %v1278 = vld [vmem:[%s1252 + $0xc8] sm:$0xff]
  %v1279 = vld [vmem:[%s1252 + $0xd0] sm:$0xff]
  %v1280 = vld [vmem:[%s1252 + $0xd8] sm:$0xff]
  %v1281 = vld [vmem:[%s1252 + $0xe0] sm:$0xff]
  %v1282 = vld [vmem:[%s1252 + $0xe8] sm:$0xff]
  %v1283 = vld [vmem:[%s1252 + $0xf0] sm:$0xff]
  %v1284 = vld [vmem:[%s1252 + $0xf8] sm:$0xff]
  %1285 = vmatprep.subr.mxu0 0.0
  %1286 = vmatpush1.msra.mxu0 %v1253
  %1287 = vmatprep.subr.mxu0 0.0
  %1288 = vmatpush1.msra.mxu0 %v1254
  %1289 = vmatprep.subr.mxu0 0.0
  %1290 = vmatpush1.msra.mxu0 %v1255
  %1291 = vmatprep.subr.mxu0 0.0
  %1292 = vmatpush1.msra.mxu0 %v1256
  %1293 = vmatprep.subr.mxu0 0.0
  %1294 = vmatpush1.msra.mxu0 %v1257
  %1295 = vmatprep.subr.mxu0 0.0
  %1296 = vmatpush1.msra.mxu0 %v1258
  %1297 = vmatprep.subr.mxu0 0.0
  %1298 = vmatpush1.msra.mxu0 %v1259
  %1299 = vmatprep.subr.mxu0 0.0
  %1300 = vmatpush1.msra.mxu0 %v1260
  %1301 = vmatprep.subr.mxu0 0.0
  %1302 = vmatpush1.msra.mxu0 %v1261
  %1303 = vmatprep.subr.mxu0 0.0
  %1304 = vmatpush1.msra.mxu0 %v1262
  %1305 = vmatprep.subr.mxu0 0.0
  %1306 = vmatpush1.msra.mxu0 %v1263
  %1307 = vmatprep.subr.mxu0 0.0
  %1308 = vmatpush1.msra.mxu0 %v1264
  %1309 = vmatprep.subr.mxu0 0.0
  %1310 = vmatpush1.msra.mxu0 %v1265
  %1311 = vmatprep.subr.mxu0 0.0
  %1312 = vmatpush1.msra.mxu0 %v1266
  %1313 = vmatprep.subr.mxu0 0.0
  %1314 = vmatpush1.msra.mxu0 %v1267
  %1315 = vmatprep.subr.mxu0 0.0
  %1316 = vmatpush1.msra.mxu0 %v1268
  %1317 = vmatprep.subr.mxu0 0.0
  %1318 = vmatpush1.msra.mxu0 %v1269
  %1319 = vmatprep.subr.mxu0 0.0
  %1320 = vmatpush1.msra.mxu0 %v1270
  %1321 = vmatprep.subr.mxu0 0.0
  %1322 = vmatpush1.msra.mxu0 %v1271
  %1323 = vmatprep.subr.mxu0 0.0
  %1324 = vmatpush1.msra.mxu0 %v1272
  %1325 = vmatprep.subr.mxu0 0.0
  %1326 = vmatpush1.msra.mxu0 %v1273
  %1327 = vmatprep.subr.mxu0 0.0
  %1328 = vmatpush1.msra.mxu0 %v1274
  %1329 = vmatprep.subr.mxu0 0.0
  %1330 = vmatpush1.msra.mxu0 %v1275
  %1331 = vmatprep.subr.mxu0 0.0
  %1332 = vmatpush1.msra.mxu0 %v1276
  %1333 = vmatprep.subr.mxu0 0.0
  %1334 = vmatpush1.msra.mxu0 %v1277
  %1335 = vmatprep.subr.mxu0 0.0
  %1336 = vmatpush1.msra.mxu0 %v1278
  %1337 = vmatprep.subr.mxu0 0.0
  %1338 = vmatpush1.msra.mxu0 %v1279
  %1339 = vmatprep.subr.mxu0 0.0
  %1340 = vmatpush1.msra.mxu0 %v1280
  %1341 = vmatprep.subr.mxu0 0.0
  %1342 = vmatpush1.msra.mxu0 %v1281
  %1343 = vmatprep.subr.mxu0 0.0
  %1344 = vmatpush1.msra.mxu0 %v1282
  %1345 = vmatprep.subr.mxu0 0.0
  %1346 = vmatpush1.msra.mxu0 %v1283
  %1347 = vmatprep.subr.mxu0 0.0
  %1348 = vmatpush1.msra.mxu0 %v1284
  %1349 = vmatprep.mubr.f32.mxu0 %v938
  %1350 = vmatmul.mubr.f32.gmra.mrb[0].mxu0 %v802
  %v1351 = vpop.f32.mrb[0].mxu0
  %v1352 = vadd.f32 0.0, %v1351
  %v1353 = vpop.f32.mrb[0].mxu0
  %1354 = vdwg.mxu0
  %v1355 = vadd.f32 %v1251, %v1352
  %s1356 = scalar_lea.vmem %s3, 1024
  %v1357 = vld [vmem:[%s1356] sm:$0xff]
  %v1358 = vld [vmem:[%s1356 + $0x8] sm:$0xff]
  %v1359 = vld [vmem:[%s1356 + $0x10] sm:$0xff]
  %v1360 = vld [vmem:[%s1356 + $0x18] sm:$0xff]
  %v1361 = vld [vmem:[%s1356 + $0x20] sm:$0xff]
  %v1362 = vld [vmem:[%s1356 + $0x28] sm:$0xff]
  %v1363 = vld [vmem:[%s1356 + $0x30] sm:$0xff]
  %v1364 = vld [vmem:[%s1356 + $0x38] sm:$0xff]
  %v1365 = vld [vmem:[%s1356 + $0x40] sm:$0xff]
  %v1366 = vld [vmem:[%s1356 + $0x48] sm:$0xff]
  %v1367 = vld [vmem:[%s1356 + $0x50] sm:$0xff]
  %v1368 = vld [vmem:[%s1356 + $0x58] sm:$0xff]
  %v1369 = vld [vmem:[%s1356 + $0x60] sm:$0xff]
  %v1370 = vld [vmem:[%s1356 + $0x68] sm:$0xff]
  %v1371 = vld [vmem:[%s1356 + $0x70] sm:$0xff]
  %v1372 = vld [vmem:[%s1356 + $0x78] sm:$0xff]
  %v1373 = vld [vmem:[%s1356 + $0x80] sm:$0xff]
  %v1374 = vld [vmem:[%s1356 + $0x88] sm:$0xff]
  %v1375 = vld [vmem:[%s1356 + $0x90] sm:$0xff]
  %v1376 = vld [vmem:[%s1356 + $0x98] sm:$0xff]
  %v1377 = vld [vmem:[%s1356 + $0xa0] sm:$0xff]
  %v1378 = vld [vmem:[%s1356 + $0xa8] sm:$0xff]
  %v1379 = vld [vmem:[%s1356 + $0xb0] sm:$0xff]
  %v1380 = vld [vmem:[%s1356 + $0xb8] sm:$0xff]
  %v1381 = vld [vmem:[%s1356 + $0xc0] sm:$0xff]
  %v1382 = vld [vmem:[%s1356 + $0xc8] sm:$0xff]
  %v1383 = vld [vmem:[%s1356 + $0xd0] sm:$0xff]
  %v1384 = vld [vmem:[%s1356 + $0xd8] sm:$0xff]
  %v1385 = vld [vmem:[%s1356 + $0xe0] sm:$0xff]
  %v1386 = vld [vmem:[%s1356 + $0xe8] sm:$0xff]
  %v1387 = vld [vmem:[%s1356 + $0xf0] sm:$0xff]
  %v1388 = vld [vmem:[%s1356 + $0xf8] sm:$0xff]
  %1389 = vmatprep.subr.mxu0 0.0
  %1390 = vmatpush1.msra.mxu0 %v1357
  %1391 = vmatprep.subr.mxu0 0.0
  %1392 = vmatpush1.msra.mxu0 %v1358
  %1393 = vmatprep.subr.mxu0 0.0
  %1394 = vmatpush1.msra.mxu0 %v1359
  %1395 = vmatprep.subr.mxu0 0.0
  %1396 = vmatpush1.msra.mxu0 %v1360
  %1397 = vmatprep.subr.mxu0 0.0
  %1398 = vmatpush1.msra.mxu0 %v1361
  %1399 = vmatprep.subr.mxu0 0.0
  %1400 = vmatpush1.msra.mxu0 %v1362
  %1401 = vmatprep.subr.mxu0 0.0
  %1402 = vmatpush1.msra.mxu0 %v1363
  %1403 = vmatprep.subr.mxu0 0.0
  %1404 = vmatpush1.msra.mxu0 %v1364
  %1405 = vmatprep.subr.mxu0 0.0
  %1406 = vmatpush1.msra.mxu0 %v1365
  %1407 = vmatprep.subr.mxu0 0.0
  %1408 = vmatpush1.msra.mxu0 %v1366
  %1409 = vmatprep.subr.mxu0 0.0
  %1410 = vmatpush1.msra.mxu0 %v1367
  %1411 = vmatprep.subr.mxu0 0.0
  %1412 = vmatpush1.msra.mxu0 %v1368
  %1413 = vmatprep.subr.mxu0 0.0
  %1414 = vmatpush1.msra.mxu0 %v1369
  %1415 = vmatprep.subr.mxu0 0.0
  %1416 = vmatpush1.msra.mxu0 %v1370
  %1417 = vmatprep.subr.mxu0 0.0
  %1418 = vmatpush1.msra.mxu0 %v1371
  %1419 = vmatprep.subr.mxu0 0.0
  %1420 = vmatpush1.msra.mxu0 %v1372
  %1421 = vmatprep.subr.mxu0 0.0
  %1422 = vmatpush1.msra.mxu0 %v1373
  %1423 = vmatprep.subr.mxu0 0.0
  %1424 = vmatpush1.msra.mxu0 %v1374
  %1425 = vmatprep.subr.mxu0 0.0
  %1426 = vmatpush1.msra.mxu0 %v1375
  %1427 = vmatprep.subr.mxu0 0.0
  %1428 = vmatpush1.msra.mxu0 %v1376
  %1429 = vmatprep.subr.mxu0 0.0
  %1430 = vmatpush1.msra.mxu0 %v1377
  %1431 = vmatprep.subr.mxu0 0.0
  %1432 = vmatpush1.msra.mxu0 %v1378
  %1433 = vmatprep.subr.mxu0 0.0
  %1434 = vmatpush1.msra.mxu0 %v1379
  %1435 = vmatprep.subr.mxu0 0.0
  %1436 = vmatpush1.msra.mxu0 %v1380
  %1437 = vmatprep.subr.mxu0 0.0
  %1438 = vmatpush1.msra.mxu0 %v1381
  %1439 = vmatprep.subr.mxu0 0.0
  %1440 = vmatpush1.msra.mxu0 %v1382
  %1441 = vmatprep.subr.mxu0 0.0
  %1442 = vmatpush1.msra.mxu0 %v1383
  %1443 = vmatprep.subr.mxu0 0.0
  %1444 = vmatpush1.msra.mxu0 %v1384
  %1445 = vmatprep.subr.mxu0 0.0
  %1446 = vmatpush1.msra.mxu0 %v1385
  %1447 = vmatprep.subr.mxu0 0.0
  %1448 = vmatpush1.msra.mxu0 %v1386
  %1449 = vmatprep.subr.mxu0 0.0
  %1450 = vmatpush1.msra.mxu0 %v1387
  %1451 = vmatprep.subr.mxu0 0.0
  %1452 = vmatpush1.msra.mxu0 %v1388
  %1453 = vmatprep.mubr.f32.mxu0 %v939
  %1454 = vmatmul.mubr.f32.gmra.mrb[0].mxu0 %v803
  %v1455 = vpop.f32.mrb[0].mxu0
  %v1456 = vadd.f32 0.0, %v1455
  %v1457 = vpop.f32.mrb[0].mxu0
  %1458 = vdwg.mxu0
  %v1459 = vadd.f32 %v1355, %v1456
  %s1460 = scalar_lea.vmem %s3, 1280
  %v1461 = vld [vmem:[%s1460] sm:$0xff]
  %v1462 = vld [vmem:[%s1460 + $0x8] sm:$0xff]
  %v1463 = vld [vmem:[%s1460 + $0x10] sm:$0xff]
  %v1464 = vld [vmem:[%s1460 + $0x18] sm:$0xff]
  %v1465 = vld [vmem:[%s1460 + $0x20] sm:$0xff]
  %v1466 = vld [vmem:[%s1460 + $0x28] sm:$0xff]
  %v1467 = vld [vmem:[%s1460 + $0x30] sm:$0xff]
  %v1468 = vld [vmem:[%s1460 + $0x38] sm:$0xff]
  %v1469 = vld [vmem:[%s1460 + $0x40] sm:$0xff]
  %v1470 = vld [vmem:[%s1460 + $0x48] sm:$0xff]
  %v1471 = vld [vmem:[%s1460 + $0x50] sm:$0xff]
  %v1472 = vld [vmem:[%s1460 + $0x58] sm:$0xff]
  %v1473 = vld [vmem:[%s1460 + $0x60] sm:$0xff]
  %v1474 = vld [vmem:[%s1460 + $0x68] sm:$0xff]
  %v1475 = vld [vmem:[%s1460 + $0x70] sm:$0xff]
  %v1476 = vld [vmem:[%s1460 + $0x78] sm:$0xff]
  %v1477 = vld [vmem:[%s1460 + $0x80] sm:$0xff]
  %v1478 = vld [vmem:[%s1460 + $0x88] sm:$0xff]
  %v1479 = vld [vmem:[%s1460 + $0x90] sm:$0xff]
  %v1480 = vld [vmem:[%s1460 + $0x98] sm:$0xff]
  %v1481 = vld [vmem:[%s1460 + $0xa0] sm:$0xff]
  %v1482 = vld [vmem:[%s1460 + $0xa8] sm:$0xff]
  %v1483 = vld [vmem:[%s1460 + $0xb0] sm:$0xff]
  %v1484 = vld [vmem:[%s1460 + $0xb8] sm:$0xff]
  %v1485 = vld [vmem:[%s1460 + $0xc0] sm:$0xff]
  %v1486 = vld [vmem:[%s1460 + $0xc8] sm:$0xff]
  %v1487 = vld [vmem:[%s1460 + $0xd0] sm:$0xff]
  %v1488 = vld [vmem:[%s1460 + $0xd8] sm:$0xff]
  %v1489 = vld [vmem:[%s1460 + $0xe0] sm:$0xff]
  %v1490 = vld [vmem:[%s1460 + $0xe8] sm:$0xff]
  %v1491 = vld [vmem:[%s1460 + $0xf0] sm:$0xff]
  %v1492 = vld [vmem:[%s1460 + $0xf8] sm:$0xff]
  %1493 = vmatprep.subr.mxu0 0.0
  %1494 = vmatpush1.msra.mxu0 %v1461
  %1495 = vmatprep.subr.mxu0 0.0
  %1496 = vmatpush1.msra.mxu0 %v1462
  %1497 = vmatprep.subr.mxu0 0.0
  %1498 = vmatpush1.msra.mxu0 %v1463
  %1499 = vmatprep.subr.mxu0 0.0
  %1500 = vmatpush1.msra.mxu0 %v1464
  %1501 = vmatprep.subr.mxu0 0.0
  %1502 = vmatpush1.msra.mxu0 %v1465
  %1503 = vmatprep.subr.mxu0 0.0
  %1504 = vmatpush1.msra.mxu0 %v1466
  %1505 = vmatprep.subr.mxu0 0.0
  %1506 = vmatpush1.msra.mxu0 %v1467
  %1507 = vmatprep.subr.mxu0 0.0
  %1508 = vmatpush1.msra.mxu0 %v1468
  %1509 = vmatprep.subr.mxu0 0.0
  %1510 = vmatpush1.msra.mxu0 %v1469
  %1511 = vmatprep.subr.mxu0 0.0
  %1512 = vmatpush1.msra.mxu0 %v1470
  %1513 = vmatprep.subr.mxu0 0.0
  %1514 = vmatpush1.msra.mxu0 %v1471
  %1515 = vmatprep.subr.mxu0 0.0
  %1516 = vmatpush1.msra.mxu0 %v1472
  %1517 = vmatprep.subr.mxu0 0.0
  %1518 = vmatpush1.msra.mxu0 %v1473
  %1519 = vmatprep.subr.mxu0 0.0
  %1520 = vmatpush1.msra.mxu0 %v1474
  %1521 = vmatprep.subr.mxu0 0.0
  %1522 = vmatpush1.msra.mxu0 %v1475
  %1523 = vmatprep.subr.mxu0 0.0
  %1524 = vmatpush1.msra.mxu0 %v1476
  %1525 = vmatprep.subr.mxu0 0.0
  %1526 = vmatpush1.msra.mxu0 %v1477
  %1527 = vmatprep.subr.mxu0 0.0
  %1528 = vmatpush1.msra.mxu0 %v1478
  %1529 = vmatprep.subr.mxu0 0.0
  %1530 = vmatpush1.msra.mxu0 %v1479
  %1531 = vmatprep.subr.mxu0 0.0
  %1532 = vmatpush1.msra.mxu0 %v1480
  %1533 = vmatprep.subr.mxu0 0.0
  %1534 = vmatpush1.msra.mxu0 %v1481
  %1535 = vmatprep.subr.mxu0 0.0
  %1536 = vmatpush1.msra.mxu0 %v1482
  %1537 = vmatprep.subr.mxu0 0.0
  %1538 = vmatpush1.msra.mxu0 %v1483
  %1539 = vmatprep.subr.mxu0 0.0
  %1540 = vmatpush1.msra.mxu0 %v1484
  %1541 = vmatprep.subr.mxu0 0.0
  %1542 = vmatpush1.msra.mxu0 %v1485
  %1543 = vmatprep.subr.mxu0 0.0
  %1544 = vmatpush1.msra.mxu0 %v1486
  %1545 = vmatprep.subr.mxu0 0.0
  %1546 = vmatpush1.msra.mxu0 %v1487
  %1547 = vmatprep.subr.mxu0 0.0
  %1548 = vmatpush1.msra.mxu0 %v1488
  %1549 = vmatprep.subr.mxu0 0.0
  %1550 = vmatpush1.msra.mxu0 %v1489
  %1551 = vmatprep.subr.mxu0 0.0
  %1552 = vmatpush1.msra.mxu0 %v1490
  %1553 = vmatprep.subr.mxu0 0.0
  %1554 = vmatpush1.msra.mxu0 %v1491
  %1555 = vmatprep.subr.mxu0 0.0
  %1556 = vmatpush1.msra.mxu0 %v1492
  %1557 = vmatprep.mubr.f32.mxu0 %v940
  %1558 = vmatmul.mubr.f32.gmra.mrb[0].mxu0 %v804
  %v1559 = vpop.f32.mrb[0].mxu0
  %v1560 = vadd.f32 0.0, %v1559
  %v1561 = vpop.f32.mrb[0].mxu0
  %1562 = vdwg.mxu0
  %v1563 = vadd.f32 %v1459, %v1560
  %s1564 = scalar_lea.vmem %s3, 1536
  %v1565 = vld [vmem:[%s1564] sm:$0xff]
  %v1566 = vld [vmem:[%s1564 + $0x8] sm:$0xff]
  %v1567 = vld [vmem:[%s1564 + $0x10] sm:$0xff]
  %v1568 = vld [vmem:[%s1564 + $0x18] sm:$0xff]
  %v1569 = vld [vmem:[%s1564 + $0x20] sm:$0xff]
  %v1570 = vld [vmem:[%s1564 + $0x28] sm:$0xff]
  %v1571 = vld [vmem:[%s1564 + $0x30] sm:$0xff]
  %v1572 = vld [vmem:[%s1564 + $0x38] sm:$0xff]
  %v1573 = vld [vmem:[%s1564 + $0x40] sm:$0xff]
  %v1574 = vld [vmem:[%s1564 + $0x48] sm:$0xff]
  %v1575 = vld [vmem:[%s1564 + $0x50] sm:$0xff]
  %v1576 = vld [vmem:[%s1564 + $0x58] sm:$0xff]
  %v1577 = vld [vmem:[%s1564 + $0x60] sm:$0xff]
  %v1578 = vld [vmem:[%s1564 + $0x68] sm:$0xff]
  %v1579 = vld [vmem:[%s1564 + $0x70] sm:$0xff]
  %v1580 = vld [vmem:[%s1564 + $0x78] sm:$0xff]
  %v1581 = vld [vmem:[%s1564 + $0x80] sm:$0xff]
  %v1582 = vld [vmem:[%s1564 + $0x88] sm:$0xff]
  %v1583 = vld [vmem:[%s1564 + $0x90] sm:$0xff]
  %v1584 = vld [vmem:[%s1564 + $0x98] sm:$0xff]
  %v1585 = vld [vmem:[%s1564 + $0xa0] sm:$0xff]
  %v1586 = vld [vmem:[%s1564 + $0xa8] sm:$0xff]
  %v1587 = vld [vmem:[%s1564 + $0xb0] sm:$0xff]
  %v1588 = vld [vmem:[%s1564 + $0xb8] sm:$0xff]
  %v1589 = vld [vmem:[%s1564 + $0xc0] sm:$0xff]
  %v1590 = vld [vmem:[%s1564 + $0xc8] sm:$0xff]
  %v1591 = vld [vmem:[%s1564 + $0xd0] sm:$0xff]
  %v1592 = vld [vmem:[%s1564 + $0xd8] sm:$0xff]
  %v1593 = vld [vmem:[%s1564 + $0xe0] sm:$0xff]
  %v1594 = vld [vmem:[%s1564 + $0xe8] sm:$0xff]
  %v1595 = vld [vmem:[%s1564 + $0xf0] sm:$0xff]
  %v1596 = vld [vmem:[%s1564 + $0xf8] sm:$0xff]
  %1597 = vmatprep.subr.mxu0 0.0
  %1598 = vmatpush1.msra.mxu0 %v1565
  %1599 = vmatprep.subr.mxu0 0.0
  %1600 = vmatpush1.msra.mxu0 %v1566
  %1601 = vmatprep.subr.mxu0 0.0
  %1602 = vmatpush1.msra.mxu0 %v1567
  %1603 = vmatprep.subr.mxu0 0.0
  %1604 = vmatpush1.msra.mxu0 %v1568
  %1605 = vmatprep.subr.mxu0 0.0
  %1606 = vmatpush1.msra.mxu0 %v1569
  %1607 = vmatprep.subr.mxu0 0.0
  %1608 = vmatpush1.msra.mxu0 %v1570
  %1609 = vmatprep.subr.mxu0 0.0
  %1610 = vmatpush1.msra.mxu0 %v1571
  %1611 = vmatprep.subr.mxu0 0.0
  %1612 = vmatpush1.msra.mxu0 %v1572
  %1613 = vmatprep.subr.mxu0 0.0
  %1614 = vmatpush1.msra.mxu0 %v1573
  %1615 = vmatprep.subr.mxu0 0.0
  %1616 = vmatpush1.msra.mxu0 %v1574
  %1617 = vmatprep.subr.mxu0 0.0
  %1618 = vmatpush1.msra.mxu0 %v1575
  %1619 = vmatprep.subr.mxu0 0.0
  %1620 = vmatpush1.msra.mxu0 %v1576
  %1621 = vmatprep.subr.mxu0 0.0
  %1622 = vmatpush1.msra.mxu0 %v1577
  %1623 = vmatprep.subr.mxu0 0.0
  %1624 = vmatpush1.msra.mxu0 %v1578
  %1625 = vmatprep.subr.mxu0 0.0
  %1626 = vmatpush1.msra.mxu0 %v1579
  %1627 = vmatprep.subr.mxu0 0.0
  %1628 = vmatpush1.msra.mxu0 %v1580
  %1629 = vmatprep.subr.mxu0 0.0
  %1630 = vmatpush1.msra.mxu0 %v1581
  %1631 = vmatprep.subr.mxu0 0.0
  %1632 = vmatpush1.msra.mxu0 %v1582
  %1633 = vmatprep.subr.mxu0 0.0
  %1634 = vmatpush1.msra.mxu0 %v1583
  %1635 = vmatprep.subr.mxu0 0.0
  %1636 = vmatpush1.msra.mxu0 %v1584
  %1637 = vmatprep.subr.mxu0 0.0
  %1638 = vmatpush1.msra.mxu0 %v1585
  %1639 = vmatprep.subr.mxu0 0.0
  %1640 = vmatpush1.msra.mxu0 %v1586
  %1641 = vmatprep.subr.mxu0 0.0
  %1642 = vmatpush1.msra.mxu0 %v1587
  %1643 = vmatprep.subr.mxu0 0.0
  %1644 = vmatpush1.msra.mxu0 %v1588
  %1645 = vmatprep.subr.mxu0 0.0
  %1646 = vmatpush1.msra.mxu0 %v1589
  %1647 = vmatprep.subr.mxu0 0.0
  %1648 = vmatpush1.msra.mxu0 %v1590
  %1649 = vmatprep.subr.mxu0 0.0
  %1650 = vmatpush1.msra.mxu0 %v1591
  %1651 = vmatprep.subr.mxu0 0.0
  %1652 = vmatpush1.msra.mxu0 %v1592
  %1653 = vmatprep.subr.mxu0 0.0
  %1654 = vmatpush1.msra.mxu0 %v1593
  %1655 = vmatprep.subr.mxu0 0.0
  %1656 = vmatpush1.msra.mxu0 %v1594
  %1657 = vmatprep.subr.mxu0 0.0
  %1658 = vmatpush1.msra.mxu0 %v1595
  %1659 = vmatprep.subr.mxu0 0.0
  %1660 = vmatpush1.msra.mxu0 %v1596
  %1661 = vmatprep.mubr.f32.mxu0 %v941
  %1662 = vmatmul.mubr.f32.gmra.mrb[0].mxu0 %v805
  %v1663 = vpop.f32.mrb[0].mxu0
  %v1664 = vadd.f32 0.0, %v1663
  %v1665 = vpop.f32.mrb[0].mxu0
  %1666 = vdwg.mxu0
  %v1667 = vadd.f32 %v1563, %v1664
  %s1668 = scalar_lea.vmem %s3, 1792
  %v1669 = vld [vmem:[%s1668] sm:$0xff]
  %v1670 = vld [vmem:[%s1668 + $0x8] sm:$0xff]
  %v1671 = vld [vmem:[%s1668 + $0x10] sm:$0xff]
  %v1672 = vld [vmem:[%s1668 + $0x18] sm:$0xff]
  %v1673 = vld [vmem:[%s1668 + $0x20] sm:$0xff]
  %v1674 = vld [vmem:[%s1668 + $0x28] sm:$0xff]
  %v1675 = vld [vmem:[%s1668 + $0x30] sm:$0xff]
  %v1676 = vld [vmem:[%s1668 + $0x38] sm:$0xff]
  %v1677 = vld [vmem:[%s1668 + $0x40] sm:$0xff]
  %v1678 = vld [vmem:[%s1668 + $0x48] sm:$0xff]
  %v1679 = vld [vmem:[%s1668 + $0x50] sm:$0xff]
  %v1680 = vld [vmem:[%s1668 + $0x58] sm:$0xff]
  %v1681 = vld [vmem:[%s1668 + $0x60] sm:$0xff]
  %v1682 = vld [vmem:[%s1668 + $0x68] sm:$0xff]
  %v1683 = vld [vmem:[%s1668 + $0x70] sm:$0xff]
  %v1684 = vld [vmem:[%s1668 + $0x78] sm:$0xff]
  %v1685 = vld [vmem:[%s1668 + $0x80] sm:$0xff]
  %v1686 = vld [vmem:[%s1668 + $0x88] sm:$0xff]
  %v1687 = vld [vmem:[%s1668 + $0x90] sm:$0xff]
  %v1688 = vld [vmem:[%s1668 + $0x98] sm:$0xff]
  %v1689 = vld [vmem:[%s1668 + $0xa0] sm:$0xff]
  %v1690 = vld [vmem:[%s1668 + $0xa8] sm:$0xff]
  %v1691 = vld [vmem:[%s1668 + $0xb0] sm:$0xff]
  %v1692 = vld [vmem:[%s1668 + $0xb8] sm:$0xff]
  %v1693 = vld [vmem:[%s1668 + $0xc0] sm:$0xff]
  %v1694 = vld [vmem:[%s1668 + $0xc8] sm:$0xff]
  %v1695 = vld [vmem:[%s1668 + $0xd0] sm:$0xff]
  %v1696 = vld [vmem:[%s1668 + $0xd8] sm:$0xff]
  %v1697 = vld [vmem:[%s1668 + $0xe0] sm:$0xff]
  %v1698 = vld [vmem:[%s1668 + $0xe8] sm:$0xff]
  %v1699 = vld [vmem:[%s1668 + $0xf0] sm:$0xff]
  %v1700 = vld [vmem:[%s1668 + $0xf8] sm:$0xff]
  %1701 = vmatprep.subr.mxu0 0.0
  %1702 = vmatpush1.msra.mxu0 %v1669
  %1703 = vmatprep.subr.mxu0 0.0
  %1704 = vmatpush1.msra.mxu0 %v1670
  %1705 = vmatprep.subr.mxu0 0.0
  %1706 = vmatpush1.msra.mxu0 %v1671
  %1707 = vmatprep.subr.mxu0 0.0
  %1708 = vmatpush1.msra.mxu0 %v1672
  %1709 = vmatprep.subr.mxu0 0.0
  %1710 = vmatpush1.msra.mxu0 %v1673
  %1711 = vmatprep.subr.mxu0 0.0
  %1712 = vmatpush1.msra.mxu0 %v1674
  %1713 = vmatprep.subr.mxu0 0.0
  %1714 = vmatpush1.msra.mxu0 %v1675
  %1715 = vmatprep.subr.mxu0 0.0
  %1716 = vmatpush1.msra.mxu0 %v1676
  %1717 = vmatprep.subr.mxu0 0.0
  %1718 = vmatpush1.msra.mxu0 %v1677
  %1719 = vmatprep.subr.mxu0 0.0
  %1720 = vmatpush1.msra.mxu0 %v1678
  %1721 = vmatprep.subr.mxu0 0.0
  %1722 = vmatpush1.msra.mxu0 %v1679
  %1723 = vmatprep.subr.mxu0 0.0
  %1724 = vmatpush1.msra.mxu0 %v1680
  %1725 = vmatprep.subr.mxu0 0.0
  %1726 = vmatpush1.msra.mxu0 %v1681
  %1727 = vmatprep.subr.mxu0 0.0
  %1728 = vmatpush1.msra.mxu0 %v1682
  %1729 = vmatprep.subr.mxu0 0.0
  %1730 = vmatpush1.msra.mxu0 %v1683
  %1731 = vmatprep.subr.mxu0 0.0
  %1732 = vmatpush1.msra.mxu0 %v1684
  %1733 = vmatprep.subr.mxu0 0.0
  %1734 = vmatpush1.msra.mxu0 %v1685
  %1735 = vmatprep.subr.mxu0 0.0
  %1736 = vmatpush1.msra.mxu0 %v1686
  %1737 = vmatprep.subr.mxu0 0.0
  %1738 = vmatpush1.msra.mxu0 %v1687
  %1739 = vmatprep.subr.mxu0 0.0
  %1740 = vmatpush1.msra.mxu0 %v1688
  %1741 = vmatprep.subr.mxu0 0.0
  %1742 = vmatpush1.msra.mxu0 %v1689
  %1743 = vmatprep.subr.mxu0 0.0
  %1744 = vmatpush1.msra.mxu0 %v1690
  %1745 = vmatprep.subr.mxu0 0.0
  %1746 = vmatpush1.msra.mxu0 %v1691
  %1747 = vmatprep.subr.mxu0 0.0
  %1748 = vmatpush1.msra.mxu0 %v1692
  %1749 = vmatprep.subr.mxu0 0.0
  %1750 = vmatpush1.msra.mxu0 %v1693
  %1751 = vmatprep.subr.mxu0 0.0
  %1752 = vmatpush1.msra.mxu0 %v1694
  %1753 = vmatprep.subr.mxu0 0.0
  %1754 = vmatpush1.msra.mxu0 %v1695
  %1755 = vmatprep.subr.mxu0 0.0
  %1756 = vmatpush1.msra.mxu0 %v1696
  %1757 = vmatprep.subr.mxu0 0.0
  %1758 = vmatpush1.msra.mxu0 %v1697
  %1759 = vmatprep.subr.mxu0 0.0
  %1760 = vmatpush1.msra.mxu0 %v1698
  %1761 = vmatprep.subr.mxu0 0.0
  %1762 = vmatpush1.msra.mxu0 %v1699
  %1763 = vmatprep.subr.mxu0 0.0
  %1764 = vmatpush1.msra.mxu0 %v1700
  %1765 = vmatprep.mubr.f32.mxu0 %v942
  %1766 = vmatmul.mubr.f32.gmra.mrb[0].mxu0 %v806
  %v1767 = vpop.f32.mrb[0].mxu0
  %v1768 = vadd.f32 0.0, %v1767
  %v1769 = vpop.f32.mrb[0].mxu0
  %1770 = vdwg.mxu0
  %v1771 = vadd.f32 %v1667, %v1768
  %v1772 = vld [vmem:[%s4] sm:$0x1]
  %v1774 = vlaneseq
  %v1775 = vshrl.u32 %v1774, 7
  %v1776 = vsub.s32 0, %v1775
  %v1777 = vrot.slane %v1772, %v1776
  %v1779 = vadd.f32 %v1771, %v1777
  %v1780 = vmax.f32 %v1779, 0.0
  %v1781 = vld [vmem:[%s5] sm:$0xff]
  %v1782 = vld [vmem:[%s5 + $0x8] sm:$0xff]
  %v1783 = vld [vmem:[%s5 + $0x10] sm:$0xff]
  %v1784 = vld [vmem:[%s5 + $0x18] sm:$0xff]
  %v1785 = vld [vmem:[%s6] sm:$0x1]
  %v1787 = vlaneseq
  %v1788 = vshrl.u32 %v1787, 7
  %v1789 = vsub.s32 0, %v1788
  %v1790 = vrot.slane %v1785, %v1789
  %vm1792 = vcmask 261120
  %v1794 = vsel %vm1792, %v1780, 0
  %1796 = vmatprep.subr.mxu0 0.0
  %1797 = vmatpush1.msra.mxu0 %v1781
  %1798 = vmatprep.subr.mxu0 0.0
  %1799 = vmatpush1.msra.mxu0 %v1782
  %1800 = vmatprep.subr.mxu0 0.0
  %1801 = vmatpush1.msra.mxu0 %v1783
  %1802 = vmatprep.subr.mxu0 0.0
  %1803 = vmatpush1.msra.mxu0 %v1784
  %1804 = vmatprep.subr.mxu0 0.0
  %1805 = vmatpush1.msra.mxu0 0.0
  %1806 = vmatprep.subr.mxu0 0.0
  %1807 = vmatpush1.msra.mxu0 0.0
  %1808 = vmatprep.subr.mxu0 0.0
  %1809 = vmatpush1.msra.mxu0 0.0
  %1810 = vmatprep.subr.mxu0 0.0
  %1811 = vmatpush1.msra.mxu0 0.0
  %1812 = vmatprep.subr.mxu0 0.0
  %1813 = vmatpush1.msra.mxu0 0.0
  %1814 = vmatprep.subr.mxu0 0.0
  %1815 = vmatpush1.msra.mxu0 0.0
  %1816 = vmatprep.subr.mxu0 0.0
  %1817 = vmatpush1.msra.mxu0 0.0
  %1818 = vmatprep.subr.mxu0 0.0
  %1819 = vmatpush1.msra.mxu0 0.0
  %1820 = vmatprep.subr.mxu0 0.0
  %1821 = vmatpush1.msra.mxu0 0.0
  %1822 = vmatprep.subr.mxu0 0.0
  %1823 = vmatpush1.msra.mxu0 0.0
  %1824 = vmatprep.subr.mxu0 0.0
  %1825 = vmatpush1.msra.mxu0 0.0
  %1826 = vmatprep.subr.mxu0 0.0
  %1827 = vmatpush1.msra.mxu0 0.0
  %1828 = vmatprep.subr.mxu0 0.0
  %1829 = vmatpush1.msra.mxu0 0.0
  %1830 = vmatprep.subr.mxu0 0.0
  %1831 = vmatpush1.msra.mxu0 0.0
  %1832 = vmatprep.subr.mxu0 0.0
  %1833 = vmatpush1.msra.mxu0 0.0
  %1834 = vmatprep.subr.mxu0 0.0
  %1835 = vmatpush1.msra.mxu0 0.0
  %1836 = vmatprep.subr.mxu0 0.0
  %1837 = vmatpush1.msra.mxu0 0.0
  %1838 = vmatprep.subr.mxu0 0.0
  %1839 = vmatpush1.msra.mxu0 0.0
  %1840 = vmatprep.subr.mxu0 0.0
  %1841 = vmatpush1.msra.mxu0 0.0
  %1842 = vmatprep.subr.mxu0 0.0
  %1843 = vmatpush1.msra.mxu0 0.0
  %1844 = vmatprep.subr.mxu0 0.0
  %1845 = vmatpush1.msra.mxu0 0.0
  %1846 = vmatprep.subr.mxu0 0.0
  %1847 = vmatpush1.msra.mxu0 0.0
  %1848 = vmatprep.subr.mxu0 0.0
  %1849 = vmatpush1.msra.mxu0 0.0
  %1850 = vmatprep.subr.mxu0 0.0
  %1851 = vmatpush1.msra.mxu0 0.0
  %1852 = vmatprep.subr.mxu0 0.0
  %1853 = vmatpush1.msra.mxu0 0.0
  %1854 = vmatprep.subr.mxu0 0.0
  %1855 = vmatpush1.msra.mxu0 0.0
  %1856 = vmatprep.subr.mxu0 0.0
  %1857 = vmatpush1.msra.mxu0 0.0
  %1858 = vmatprep.subr.mxu0 0.0
  %1859 = vmatpush1.msra.mxu0 0.0
  %1860 = vmatprep.mubr.f32.mxu0 0.0
  %1861 = vmatmul.mubr.f32.gmra.mrb[0].mxu0 %v1794
  %v1862 = vpop.f32.mrb[0].mxu0
  %v1863 = vadd.f32 %v1790, %v1862
  %v1864 = vpop.f32.mrb[0].mxu0
  %1865 = vdwg.mxu0
  %1866 = vst [vmem:[%s7] sm:$0xff] %v1863
  // Predicated region
  $region30: #{dann_forward.1} parent=0 // pred_check
    _
  $region31: #{dann_forward.1} parent=0 // pred_check_branch
    %1868 = sbr.rel (0) target = $region33
  $region32: #{dann_forward.1} parent=0 // pred_region
    _
  $region33: #{dann_forward.1} parent=0 // pred_fallthru
    _
  // Predicated region
  $region34: #{dann_forward.1} parent=0 // pred_check
    _
  $region35: #{dann_forward.1} parent=0 // pred_check_branch
    %1870 = sbr.rel (0) target = $region37
  $region36: #{dann_forward.1} parent=0 // pred_region
    _
  $region37: #{dann_forward.1} parent=0 // pred_fallthru
    _

</llo_original>
